<compile_context>
chip_gen: v6e
topology: v6e:2x2x1
jax: 0.10.0
libtpu: 0.0.40
codegen_flags: <defaults>
</compile_context>

<pallas_src>
import math
import functools

import jax
import jax.numpy as jnp
from jax.experimental import pallas as pl
from jax.experimental.pallas import tpu as pltpu


_INV_SQRT2 = 1.0 / math.sqrt(2.0)
_LN_EPS = 1e-5


# ---------------------------------------------------------------------------
# Pallas kernel
# ---------------------------------------------------------------------------

def _gelu_exact(x):
    # Matches torch.nn.functional.gelu default (erf-based); erf/rsqrt land on the EUP.
    return 0.5 * x * (1.0 + jax.lax.erf(x * _INV_SQRT2))


def lm_head_kernel(x_ref, w1_ref, vec_ref, wout_ref, lm_bias_ref, o_ref):
    """Fused head for one (batch b, t-tile) block of rows.

    x_ref   : (t_tile, E)       f32    rows of one batch element (t order)
    w1_ref  : (E, E)            bf16
    vec_ref : (3, E)            f32    rows: [lm_head bias, ln gamma, ln beta]
    wout_ref: (E, Cpad)         bf16
    lm_bias : (1,)              f32    in SMEM (scalar)
    o_ref   : (1, t_tile, C)    bf16   slab of the (B, T, C) output
    """
    # Cast the activation tile to bf16 in VMEM (x stays f32 in HBM — no extra pass).
    x = x_ref[...].astype(jnp.bfloat16)

    # Linear(E,E): bf16 operands, f32 accumulation on the MXU.
    h = jnp.dot(x, w1_ref[...], preferred_element_type=jnp.float32)
    h = h + vec_ref[0:1, :]

    # GELU (erf) in f32.
    h = _gelu_exact(h)

    # LayerNorm over last dim, f32 statistics.
    mean = jnp.mean(h, axis=-1, keepdims=True)
    c = h - mean
    var = jnp.mean(c * c, axis=-1, keepdims=True)
    h = c * jax.lax.rsqrt(var + _LN_EPS)
    h = h * vec_ref[1:2, :] + vec_ref[2:3, :]

    # embed_out (no bias) + scalar lm_output_learned_bias (SMEM), bias add in f32,
    # then cast to the (bf16) output dtype for the store.
    logits = jnp.dot(h.astype(jnp.bfloat16), wout_ref[...],
                     preferred_element_type=jnp.float32)
    C = o_ref.shape[2]
    o_ref[0] = (logits[:, :C] + lm_bias_ref[0]).astype(o_ref.dtype)


# ---------------------------------------------------------------------------
# Tiling / VMEM budgeting
# ---------------------------------------------------------------------------

def _round_up(x, m):
    return ((x + m - 1) // m) * m


def _vmem_capacity_bytes():
    """Per-generation VMEM capacity (v5e/v6e: 128 MiB, v7x: 64 MiB)."""
    try:
        cap = getattr(pltpu.get_tpu_info(), "vmem_capacity_bytes", None)
        if cap:
            return int(cap)
    except Exception:
        pass
    return 64 << 20  # conservative fallback (v7x-sized)


def _lm_head_vmem_bytes(t_tile, E, Cpad, C, out_itemsize):
    x_buf = 2 * t_tile * E * 4                 # f32 input rows, double-buffered
    out_buf = 2 * t_tile * C * out_itemsize    # output rows, double-buffered
    w1 = 2 * E * E * 2                         # bf16 (constant index; 2x is conservative)
    wout = 2 * E * Cpad * 2
    vecs = 2 * 3 * E * 4
    # In-kernel f32 intermediates (h, centered, logits) + bf16 tile copies.
    scratch = t_tile * (3 * E + Cpad) * 4 + t_tile * 2 * E * 2
    return x_buf + out_buf + w1 + wout + vecs + scratch


def _pick_t_tile(T, B, E, Cpad, C, out_itemsize, budget, target=1024):
    """Largest multiple-of-8 row tile (<= target) fitting the VMEM budget."""
    if T <= 8:
        return T
    t = min(T - (T % 8), _round_up(target, 8))
    t = max(t, 8)
    while t > 8 and _lm_head_vmem_bytes(t, E, Cpad, C, out_itemsize) > budget:
        t -= 8
    # Guarantee >=2 grid steps overall so both v7x TensorCores get work.
    if B == 1 and pl.cdiv(T, t) < 2 and T >= 16:
        t = max(8, _round_up(pl.cdiv(T, 2), 8))
    return t


# ---------------------------------------------------------------------------
# Wrapper
# ---------------------------------------------------------------------------

def lm_head_from_tbe(x_tbe, params, *, out_dtype=jnp.bfloat16):
    """x_tbe: (T, B, E) float32 (inner_states[-1]).  Returns logits (B, T, C).

    The (T,B,E)->(B,T,E) transpose is folded into the BlockSpecs: the input is read
    as column slices of the (T, B*E) view, and each tile is written directly into the
    (B, T, C) output slab.
    """
    T, B, E = x_tbe.shape
    C = params["embed_out_w"].shape[1]
    assert E % 128 == 0, (
        "lm_head_from_tbe requires encoder_embed_dim % 128 == 0 "
        "(pad E in the caller)")  # TODO(synk): generic-E fallback path

    # Pad num_classes to a multiple of 128 only for the weight / MXU; the output
    # stays (B, T, C) and is trimmed in-register (no post-kernel slice copy).
    Cpad = _round_up(C, 128)
    wout = params["embed_out_w"]
    if Cpad != C:
        wout = jnp.pad(wout, ((0, 0), (0, Cpad - C)))

    # One (3, E) vector slab: [lm_head bias, ln gamma, ln beta].
    vecs = jnp.concatenate(
        [params["lm_head_b"], params["ln_g"], params["ln_b"]], axis=0)

    out_itemsize = jnp.dtype(out_dtype).itemsize
    capacity = _vmem_capacity_bytes()
    budget = int(capacity * 0.8)               # leave headroom for compiler scratch
    t_tile = _pick_t_tile(T, B, E, Cpad, C, out_itemsize, budget)
    n_t = pl.cdiv(T, t_tile)                   # edge tile masked by Pallas

    need = _lm_head_vmem_bytes(t_tile, E, Cpad, C, out_itemsize)
    vmem_limit = int(min(max(need + (4 << 20), 32 << 20), budget))

    # Free reshape (no HBM transpose, no dtype-cast pass).
    x2d = x_tbe.reshape(T, B * E)

    out = pl.pallas_call(
        lm_head_kernel,
        out_shape=jax.ShapeDtypeStruct((B, T, C), out_dtype),
        grid_spec=pltpu.PrefetchScalarGridSpec(
            num_scalar_prefetch=0,
            grid=(B, n_t),
            in_specs=[
                # rows t*t_tile.. for batch b  <=> columns [b*E, (b+1)*E) of (T, B*E)
                pl.BlockSpec((t_tile, E), lambda b, t: (t, b)),
                pl.BlockSpec((E, E), lambda b, t: (0, 0)),          # W1 (bf16)
                pl.BlockSpec((3, E), lambda b, t: (0, 0)),          # b1 / gamma / beta
                pl.BlockSpec((E, Cpad), lambda b, t: (0, 0)),       # W_out (bf16)
                pl.BlockSpec(memory_space=pltpu.MemorySpace.SMEM),  # lm bias scalar
            ],
            out_specs=pl.BlockSpec((1, t_tile, C), lambda b, t: (b, t, 0)),
        ),
        compiler_params=pltpu.CompilerParams(
            dimension_semantics=("parallel", "parallel"),
            vmem_limit_bytes=vmem_limit),
    )(
        x2d,
        params["lm_head_w"],
        vecs,
        wout,
        params["lm_bias"],
    )
    return out


def graphormer_forward(inner_state_last_TBE, sentence_rep, node_output, params):
    """Mirrors Graphormer.forward head (masked_tokens=None, load_softmax=True,
    share_input_output_embed=False, sent_loss=False).

    The masked_lm_pooler(sentence_rep) result is never returned by the module
    (dead code in its forward), so no kernel is launched for it.
    """
    del sentence_rep  # pooled_output is unused in the module's return value
    logits = lm_head_from_tbe(inner_state_last_TBE, params)
    return logits, node_output


# ---------------------------------------------------------------------------
# Deterministic parameter init
# ---------------------------------------------------------------------------

def make_params(key, E, C):
    ks = jax.random.split(key, 4)
    scale = 1.0 / math.sqrt(E)
    return {
        # Linear weights stored (in_features, out_features); matmul operands in bf16.
        "lm_head_w": jax.random.uniform(ks[0], (E, E), jnp.float32,
                                        -scale, scale).astype(jnp.bfloat16),
        "lm_head_b": jax.random.uniform(ks[1], (1, E), jnp.float32, -scale, scale),
        "ln_g": jnp.ones((1, E), jnp.float32),
        "ln_b": jnp.zeros((1, E), jnp.float32),
        "embed_out_w": jax.random.uniform(ks[2], (E, C), jnp.float32,
                                          -scale, scale).astype(jnp.bfloat16),
        "lm_bias": jnp.zeros((1,), jnp.float32),   # lm_output_learned_bias = zeros(1)
    }


# ---------------------------------------------------------------------------
# Reference (plain JAX, same bf16-operand / f32-accumulate strategy)
# ---------------------------------------------------------------------------

def reference_forward(inner_state_last_TBE, params):
    x = jnp.transpose(inner_state_last_TBE, (1, 0, 2)).astype(jnp.bfloat16)  # (B,T,E)
    h = jnp.dot(x, params["lm_head_w"], preferred_element_type=jnp.float32)
    h = h + params["lm_head_b"][0]
    h = _gelu_exact(h)
    mean = jnp.mean(h, axis=-1, keepdims=True)
    c = h - mean
    var = jnp.mean(c * c, axis=-1, keepdims=True)
    h = c * jax.lax.rsqrt(var + _LN_EPS)
    h = h * params["ln_g"][0] + params["ln_b"][0]
    logits = jnp.dot(h.astype(jnp.bfloat16), params["embed_out_w"],
                     preferred_element_type=jnp.float32)
    return logits + params["lm_bias"][0]


# ---------------------------------------------------------------------------

if __name__ == "__main__":
    # batch, seq(nodes), encoder_embed_dim, num_classes (small test shapes)
    B, T, E, C = 2, 256, 128, 128

    key = jax.random.PRNGKey(0)
    k_x, k_s, k_n, k_p = jax.random.split(key, 4)

    # Synthetic outputs of sentence_encoder / decoder (source not provided).
    inner_state_last = jax.random.normal(k_x, (T, B, E), jnp.float32)   # (T, B, E)
    sentence_rep = jax.random.normal(k_s, (B, E), jnp.float32)
    node_output = jax.random.normal(k_n, (B, T, 3), jnp.float32)

    params = make_params(k_p, E, C)

    fwd = jax.jit(functools.partial(graphormer_forward, params=params))
    logits, node_out = fwd(inner_state_last, sentence_rep, node_output)
    jax.block_until_ready((logits, node_out))

    ref = reference_forward(inner_state_last, params)
    assert logits.shape == (B, T, C)
    assert logits.dtype == jnp.bfloat16
    assert node_out.shape == (B, T, 3)
    assert jnp.allclose(logits.astype(jnp.float32), ref,
                        atol=3e-2, rtol=3e-2), "mismatch vs reference"

    print("KERNEL_OK")
</pallas_src>

<mosaic_0001>
module attributes {stable_mosaic.version = 11 : i64} {
  func.func @lm_head_kernel(%arg0: i32, %arg1: i32, %arg2: memref<256x128xf32, #tpu.memory_space<vmem>>, %arg3: memref<128x128xbf16, #tpu.memory_space<vmem>>, %arg4: memref<3x128xf32, #tpu.memory_space<vmem>>, %arg5: memref<128x128xbf16, #tpu.memory_space<vmem>>, %arg6: memref<1xf32, #tpu.memory_space<smem>>, %arg7: memref<1x256x128xbf16, #tpu.memory_space<vmem>>) attributes {dimension_semantics = [#tpu.dimension_semantics<parallel>, #tpu.dimension_semantics<parallel>], iteration_bounds = array<i64: 2, 1>, scalar_prefetch = 0 : i64, scratch_operands = 0 : i64, tpu.core_type = #tpu.core_type<tc>, window_params = [{transform_indices = @transform_0, window_bounds = array<i64: 256, 128>}, {pipeline_mode = #tpu.pipeline_mode<synchronous>, transform_indices = @transform_1, window_bounds = array<i64: 128, 128>}, {pipeline_mode = #tpu.pipeline_mode<synchronous>, transform_indices = @transform_2, window_bounds = array<i64: 3, 128>}, {pipeline_mode = #tpu.pipeline_mode<synchronous>, transform_indices = @transform_3, window_bounds = array<i64: 128, 128>}, {transform_indices = @transform_4, window_bounds = array<i64: 1>}, {transform_indices = @transform_5, window_bounds = array<i64: 1, 256, 128>}]} {
    %c0 = arith.constant 0 : index
    %c0_0 = arith.constant 0 : index
    %0 = vector.load %arg2[%c0, %c0_0] : memref<256x128xf32, #tpu.memory_space<vmem>>, vector<256x128xf32>
    %1 = arith.truncf %0 : vector<256x128xf32> to vector<256x128xbf16>
    %c0_1 = arith.constant 0 : index
    %c0_2 = arith.constant 0 : index
    %2 = vector.load %arg3[%c0_1, %c0_2] : memref<128x128xbf16, #tpu.memory_space<vmem>>, vector<128x128xbf16>
    %cst = arith.constant dense<0.000000e+00> : vector<256x128xf32>
    %3 = tpu.matmul %1, %2, %cst {dimension_numbers = #tpu.dot_dimension_numbers<[1], [0], [0], [1], [0, 0, 1, 1], [], []>} : vector<256x128xbf16>, vector<128x128xbf16>, vector<256x128xf32> -> vector<256x128xf32>
    %c0_3 = arith.constant 0 : index
    %c0_4 = arith.constant 0 : index
    %4 = vector.load %arg4[%c0_3, %c0_4] : memref<3x128xf32, #tpu.memory_space<vmem>>, vector<1x128xf32>
    %5 = vector.broadcast %4 : vector<1x128xf32> to vector<256x128xf32>
    %6 = arith.addf %3, %5 : vector<256x128xf32>
    %cst_5 = arith.constant 5.000000e-01 : f32
    %7 = vector.broadcast %cst_5 : f32 to vector<256x128xf32>
    %8 = arith.mulf %7, %6 : vector<256x128xf32>
    %cst_6 = arith.constant 0.707106769 : f32
    %9 = vector.broadcast %cst_6 : f32 to vector<256x128xf32>
    %10 = arith.mulf %6, %9 : vector<256x128xf32>
    %11 = math.erf %10 : vector<256x128xf32>
    %cst_7 = arith.constant 1.000000e+00 : f32
    %12 = vector.broadcast %cst_7 : f32 to vector<256x128xf32>
    %13 = arith.addf %12, %11 : vector<256x128xf32>
    %14 = arith.mulf %8, %13 : vector<256x128xf32>
    %cst_8 = arith.constant dense<0.000000e+00> : vector<256xf32>
    %15 = vector.multi_reduction <add>, %14, %cst_8 [1] : vector<256x128xf32> to vector<256xf32>
    %16 = vector.shape_cast %15 : vector<256xf32> to vector<256x1xf32>
    %cst_9 = arith.constant 1.280000e+02 : f32
    %17 = vector.broadcast %cst_9 : f32 to vector<256x1xf32>
    %18 = arith.divf %16, %17 : vector<256x1xf32>
    %19 = vector.broadcast %18 : vector<256x1xf32> to vector<256x128xf32>
    %20 = arith.subf %14, %19 : vector<256x128xf32>
    %21 = arith.mulf %20, %20 : vector<256x128xf32>
    %cst_10 = arith.constant dense<0.000000e+00> : vector<256xf32>
    %22 = vector.multi_reduction <add>, %21, %cst_10 [1] : vector<256x128xf32> to vector<256xf32>
    %23 = vector.shape_cast %22 : vector<256xf32> to vector<256x1xf32>
    %cst_11 = arith.constant 1.280000e+02 : f32
    %24 = vector.broadcast %cst_11 : f32 to vector<256x1xf32>
    %25 = arith.divf %23, %24 : vector<256x1xf32>
    %cst_12 = arith.constant 9.99999974E-6 : f32
    %26 = vector.broadcast %cst_12 : f32 to vector<256x1xf32>
    %27 = arith.addf %25, %26 : vector<256x1xf32>
    %28 = math.rsqrt %27 : vector<256x1xf32>
    %29 = vector.broadcast %28 : vector<256x1xf32> to vector<256x128xf32>
    %30 = arith.mulf %20, %29 : vector<256x128xf32>
    %c1 = arith.constant 1 : index
    %c0_13 = arith.constant 0 : index
    %31 = vector.load %arg4[%c1, %c0_13] : memref<3x128xf32, #tpu.memory_space<vmem>>, vector<1x128xf32>
    %32 = vector.broadcast %31 : vector<1x128xf32> to vector<256x128xf32>
    %33 = arith.mulf %30, %32 : vector<256x128xf32>
    %c2 = arith.constant 2 : index
    %c0_14 = arith.constant 0 : index
    %34 = vector.load %arg4[%c2, %c0_14] : memref<3x128xf32, #tpu.memory_space<vmem>>, vector<1x128xf32>
    %35 = vector.broadcast %34 : vector<1x128xf32> to vector<256x128xf32>
    %36 = arith.addf %33, %35 : vector<256x128xf32>
    %37 = arith.truncf %36 : vector<256x128xf32> to vector<256x128xbf16>
    %c0_15 = arith.constant 0 : index
    %c0_16 = arith.constant 0 : index
    %38 = vector.load %arg5[%c0_15, %c0_16] : memref<128x128xbf16, #tpu.memory_space<vmem>>, vector<128x128xbf16>
    %cst_17 = arith.constant dense<0.000000e+00> : vector<256x128xf32>
    %39 = tpu.matmul %37, %38, %cst_17 {dimension_numbers = #tpu.dot_dimension_numbers<[1], [0], [0], [1], [0, 0, 1, 1], [], []>} : vector<256x128xbf16>, vector<128x128xbf16>, vector<256x128xf32> -> vector<256x128xf32>
    %c0_18 = arith.constant 0 : index
    %40 = memref.load %arg6[%c0_18] : memref<1xf32, #tpu.memory_space<smem>>
    %41 = vector.broadcast %40 : f32 to vector<256x128xf32>
    %42 = arith.addf %39, %41 : vector<256x128xf32>
    %43 = arith.truncf %42 : vector<256x128xf32> to vector<256x128xbf16>
    %c0_19 = arith.constant 0 : index
    %c0_20 = arith.constant 0 : index
    %c0_21 = arith.constant 0 : index
    %44 = vector.load %arg7[%c0_19, %c0_20, %c0_21] : memref<1x256x128xbf16, #tpu.memory_space<vmem>>, vector<1x256x128xbf16>
    %45 = vector.shape_cast %44 : vector<1x256x128xbf16> to vector<256x128xbf16>
    %46 = vector.shape_cast %43 : vector<256x128xbf16> to vector<1x256x128xbf16>
    tpu.vector_store %arg7[%c0_19, %c0_20, %c0_21], %46 {strides = array<i32>} : memref<1x256x128xbf16, #tpu.memory_space<vmem>>, vector<1x256x128xbf16>,
    return
  }
  func.func @transform_0(%arg0: i32, %arg1: i32) -> (i32, i32) {
    %c0_i32 = arith.constant 0 : i32
    return %arg1, %arg0 : i32, i32
  }
  func.func @transform_1(%arg0: i32, %arg1: i32) -> (i32, i32) {
    %c0_i32 = arith.constant 0 : i32
    %c0_i32_0 = arith.constant 0 : i32
    %c0_i32_1 = arith.constant 0 : i32
    return %c0_i32, %c0_i32_0 : i32, i32
  }
  func.func @transform_2(%arg0: i32, %arg1: i32) -> (i32, i32) {
    %c0_i32 = arith.constant 0 : i32
    %c0_i32_0 = arith.constant 0 : i32
    %c0_i32_1 = arith.constant 0 : i32
    return %c0_i32, %c0_i32_0 : i32, i32
  }
  func.func @transform_3(%arg0: i32, %arg1: i32) -> (i32, i32) {
    %c0_i32 = arith.constant 0 : i32
    %c0_i32_0 = arith.constant 0 : i32
    %c0_i32_1 = arith.constant 0 : i32
    return %c0_i32, %c0_i32_0 : i32, i32
  }
  func.func @transform_4(%arg0: i32, %arg1: i32) -> i32 {
    %c0_i32 = arith.constant 0 : i32
    %c0_i32_0 = arith.constant 0 : i32
    return %c0_i32 : i32
  }
  func.func @transform_5(%arg0: i32, %arg1: i32) -> (i32, i32, i32) {
    %c0_i32 = arith.constant 0 : i32
    %c0_i32_0 = arith.constant 0 : i32
    return %arg0, %arg1, %c0_i32 : i32, i32, i32
  }
}

</mosaic_0001>

<llo_original>
// kernel: graphormer_forward.1
$region0: #{graphormer_forward.1}
  #allocation0 [shape = 'u32[]', space=smem, size = 0x4, offset = 0x4, fixed_abs, tag = 'smem constant byte address 0x4 - core index']
  #allocation1 [shape = 'u32[144,128]{1,0:T(1,128)}', space=vmem, size = 0x12000, scoped, tag = 'internal scratch']
  #allocation2 [shape = 'f32[1]{0:T(128)S(6)}', space=smem, size = 0x200, scoped, tag = 'scoped memory for graphormer_forward.1']
  %s0 = inlined_call_operand.vmem [shape: f32[256,256], index: 0, kind: input, shape index: {}]
  %s1 = inlined_call_operand.vmem [shape: bf16[128,128], index: 1, kind: input, shape index: {}]
  %s2 = inlined_call_operand.vmem [shape: f32[3,128], index: 2, kind: input, shape index: {}]
  %s3 = inlined_call_operand.vmem [shape: bf16[128,128], index: 3, kind: input, shape index: {}]
  %s4 = inlined_call_operand.<no memory space> [shape: f32[1], index: 4, kind: input, shape index: {}]
  %s5 = inlined_call_operand.hbm [shape: bf16[2,256,128], index: 5, kind: output, shape index: {}]
  %s6 = sld [smem:[#allocation0]]
  $region91: #{graphormer_forward.1} parent=0
    _
  %s8 = ssub.s32 1, %s6
  %s9 = scalar_select 0, %s8, %s6
  %10 = sst [smem:[#allocation2]] %s4
  $region1: #{graphormer_forward.1} parent=0
    #allocation3 [shape = 'u8[262144]{0}', space=vmem, size = 0x40000, scoped, tag = 'input window, operand 0']
    #allocation4 [shape = 'u8[131072]{0}', space=vmem, size = 0x20000, scoped, tag = 'output window, operand 0']
    #allocation5 [shape = 's32[2]{0}', space=sflag, size = 0x8, scoped, tag = 'scoped memory for graphormer_forward.1']
    %11 = vsyncpa [#allocation5], 0
    %s12 = scalar_lea.sflag [#allocation5], 1
    %13 = vsyncpa %s12, 0
    loop: start=0, step=1, limit=4
    $region2: #{graphormer_forward.1} parent=1 // loop_pre_header
      _
    $region3: #{graphormer_forward.1} parent=1 // loop_header
      %s15 = sphi 0, %s19
      %p16 = scmp.ge.s32.totalorder %s15, 4
      %s22 = sphi 0, %s34
      %s23 = sphi 0, %s30
      %s24 = sphi 0, %s22
      %s25 = sphi 0, %s23
      %s26 = sphi 0, %s24
      %s27 = sphi 0, %s25
      %s39 = sphi 0, %s41
      %s42 = sphi 0, %s39
      %s43 = sphi 0, %s42
      %s59 = sphi 0, %s43
      %s63 = sphi 0, %s63
      %s65 = sphi 0, %s63
      %s66 = sphi 0, %s65
      %s80 = sphi 0, %s66
      %s84 = sphi 0, %s84
      %s86 = sphi 0, %s84
      %s87 = sphi 0, %s86
      %s101 = sphi 0, %s87
      %s105 = sphi 0, %s105
      %s107 = sphi 0, %s105
      %s108 = sphi 0, %s107
      %s122 = sphi 0, %s108
      %s126 = sphi 0, %s126
      %s128 = sphi 0, %s126
      %s129 = sphi 0, %s128
      %s143 = sphi 0, %s129
      %s151 = sphi 0, %s153
      %s154 = sphi 0, %s151
      %s155 = sphi 0, %s154
      %s171 = sphi 0, %s155
    $region4: #{graphormer_forward.1} parent=1 // loop_header_branch
      %18 = sbr.rel (%p16) target = $region8
    $region5: #{graphormer_forward.1} parent=1 // loop_body
      %s20 = ssub.s32 %s15, 1
      %s21 = ssub.s32 %s15, 2
      %s28 = sadd.s32 1, %s23
      %p29 = scmp.ge.s32.totalorder %s28, 1
      %s30 = scalar_select %p29, 0, %s28
      %s31 = sadd.s32 1, %s22
      %s32 = scalar_select %p29, %s31, %s22
      %p33 = scmp.ge.s32.totalorder %s32, 2
      %s34 = scalar_select %p33, 0, %s32
      %s35 = ssub.s32 %s23, %s30
      %s36 = ssub.s32 %s22, %s34
      %s37 = sor.u32 %s35, %s36
      %p38 = scmp.eq.s32.totalorder %s37, 0
      %s40 = sadd.s32 %s39, 1
      %s41 = scalar_select %p38, %s39, %s40
      %p44 = pneg %p38
      %p45 = scmp.eq.s32.totalorder %s15, 1
      %p46 = por %p44, %p45
      %p47 = scmp.ne.s32.totalorder %s39, %s42
      %p48 = scmp.eq.s32.totalorder %s15, 0
      %p49 = por %p47, %p48
      %p50 = scmp.ne.s32.totalorder %s39, %s42
      %p51 = scmp.eq.s32.totalorder %s20, 1
      %p52 = por %p50, %p51
      %p53 = scmp.ne.s32.totalorder %s42, %s43
      %p54 = scmp.eq.s32.totalorder %s20, 0
      %p55 = por %p53, %p54
      %p56 = scmp.ne.s32.totalorder %s42, %s43
      %p57 = scmp.eq.s32.totalorder %s21, 1
      %p58 = por %p56, %p57
      %p60 = scmp.ne.s32.totalorder %s43, %s59
      %p61 = scmp.eq.s32.totalorder %s21, 0
      %p62 = por %p60, %p61
      %s64 = sadd.s32 %s63, 1
      %p67 = scmp.eq.s32.totalorder %s15, 1
      %p68 = scmp.ne.s32.totalorder %s63, %s65
      %p69 = scmp.eq.s32.totalorder %s15, 0
      %p70 = por %p68, %p69
      %p71 = scmp.ne.s32.totalorder %s63, %s65
      %p72 = scmp.eq.s32.totalorder %s20, 1
      %p73 = por %p71, %p72
      %p74 = scmp.ne.s32.totalorder %s65, %s66
      %p75 = scmp.eq.s32.totalorder %s20, 0
      %p76 = por %p74, %p75
      %p77 = scmp.ne.s32.totalorder %s65, %s66
      %p78 = scmp.eq.s32.totalorder %s21, 1
      %p79 = por %p77, %p78
      %p81 = scmp.ne.s32.totalorder %s66, %s80
      %p82 = scmp.eq.s32.totalorder %s21, 0
      %p83 = por %p81, %p82
      %s85 = sadd.s32 %s84, 1
      %p88 = scmp.eq.s32.totalorder %s15, 1
      %p89 = scmp.ne.s32.totalorder %s84, %s86
      %p90 = scmp.eq.s32.totalorder %s15, 0
      %p91 = por %p89, %p90
      %p92 = scmp.ne.s32.totalorder %s84, %s86
      %p93 = scmp.eq.s32.totalorder %s20, 1
      %p94 = por %p92, %p93
      %p95 = scmp.ne.s32.totalorder %s86, %s87
      %p96 = scmp.eq.s32.totalorder %s20, 0
      %p97 = por %p95, %p96
      %p98 = scmp.ne.s32.totalorder %s86, %s87
      %p99 = scmp.eq.s32.totalorder %s21, 1
      %p100 = por %p98, %p99
      %p102 = scmp.ne.s32.totalorder %s87, %s101
      %p103 = scmp.eq.s32.totalorder %s21, 0
      %p104 = por %p102, %p103
      %s106 = sadd.s32 %s105, 1
      %p109 = scmp.eq.s32.totalorder %s15, 1
      %p110 = scmp.ne.s32.totalorder %s105, %s107
      %p111 = scmp.eq.s32.totalorder %s15, 0
      %p112 = por %p110, %p111
      %p113 = scmp.ne.s32.totalorder %s105, %s107
      %p114 = scmp.eq.s32.totalorder %s20, 1
      %p115 = por %p113, %p114
      %p116 = scmp.ne.s32.totalorder %s107, %s108
      %p117 = scmp.eq.s32.totalorder %s20, 0
      %p118 = por %p116, %p117
      %p119 = scmp.ne.s32.totalorder %s107, %s108
      %p120 = scmp.eq.s32.totalorder %s21, 1
      %p121 = por %p119, %p120
      %p123 = scmp.ne.s32.totalorder %s108, %s122
      %p124 = scmp.eq.s32.totalorder %s21, 0
      %p125 = por %p123, %p124
      %s127 = sadd.s32 %s126, 1
      %p130 = scmp.eq.s32.totalorder %s15, 1
      %p131 = scmp.ne.s32.totalorder %s126, %s128
      %p132 = scmp.eq.s32.totalorder %s15, 0
      %p133 = por %p131, %p132
      %p134 = scmp.ne.s32.totalorder %s126, %s128
      %p135 = scmp.eq.s32.totalorder %s20, 1
      %p136 = por %p134, %p135
      %p137 = scmp.ne.s32.totalorder %s128, %s129
      %p138 = scmp.eq.s32.totalorder %s20, 0
      %p139 = por %p137, %p138
      %p140 = scmp.ne.s32.totalorder %s128, %s129
      %p141 = scmp.eq.s32.totalorder %s21, 1
      %p142 = por %p140, %p141
      %p144 = scmp.ne.s32.totalorder %s129, %s143
      %p145 = scmp.eq.s32.totalorder %s21, 0
      %p146 = por %p144, %p145
      %s147 = ssub.s32 %s22, %s34
      %s148 = ssub.s32 %s23, %s30
      %s149 = sor.u32 %s147, %s148
      %p150 = scmp.eq.s32.totalorder %s149, 0
      %s152 = sadd.s32 %s151, 1
      %s153 = scalar_select %p150, %s151, %s152
      %p156 = pneg %p150
      %p157 = scmp.eq.s32.totalorder %s15, 1
      %p158 = por %p156, %p157
      %p159 = scmp.ne.s32.totalorder %s151, %s154
      %p160 = scmp.eq.s32.totalorder %s15, 0
      %p161 = por %p159, %p160
      %p162 = scmp.ne.s32.totalorder %s151, %s154
      %p163 = scmp.eq.s32.totalorder %s20, 1
      %p164 = por %p162, %p163
      %p165 = scmp.ne.s32.totalorder %s154, %s155
      %p166 = scmp.eq.s32.totalorder %s20, 0
      %p167 = por %p165, %p166
      %p168 = scmp.ne.s32.totalorder %s154, %s155
      %p169 = scmp.eq.s32.totalorder %s21, 1
      %p170 = por %p168, %p169
      %p172 = scmp.ne.s32.totalorder %s155, %s171
      %p173 = scmp.eq.s32.totalorder %s21, 0
      %p174 = por %p172, %p173
      %p175 = scmp.le.s32.totalorder 1, %s15
      %p176 = scmp.lt.s32.totalorder %s15, 3
      %p177 = pnand %p175, %p176
      %p178 = pneg %p177
      // Predicated region
      $region9: #{graphormer_forward.1} parent=5 // pred_check
        _
      $region10: #{graphormer_forward.1} parent=5 // pred_check_branch
        %180 = sbr.rel (%p177) target = $region12
      $region11: #{graphormer_forward.1} parent=5 // pred_region
        %s181 = ssub.s32 %s15, 1
        // Predicated region
        $region13: #{graphormer_forward.1} parent=11 // pred_check
          %p182 = pneg %p76
        $region14: #{graphormer_forward.1} parent=11 // pred_check_branch
          %184 = sbr.rel (%p182) target = $region16
        $region15: #{graphormer_forward.1} parent=11 // pred_region
          _
        $region16: #{graphormer_forward.1} parent=11 // pred_fallthru
          _
        // Predicated region
        $region17: #{graphormer_forward.1} parent=11 // pred_check
          %p185 = pneg %p97
        $region18: #{graphormer_forward.1} parent=11 // pred_check_branch
          %187 = sbr.rel (%p185) target = $region20
        $region19: #{graphormer_forward.1} parent=11 // pred_region
          _
        $region20: #{graphormer_forward.1} parent=11 // pred_fallthru
          _
        // Predicated region
        $region21: #{graphormer_forward.1} parent=11 // pred_check
          %p188 = pneg %p118
        $region22: #{graphormer_forward.1} parent=11 // pred_check_branch
          %190 = sbr.rel (%p188) target = $region24
        $region23: #{graphormer_forward.1} parent=11 // pred_region
          _
        $region24: #{graphormer_forward.1} parent=11 // pred_fallthru
          _
        // Predicated region
        $region25: #{graphormer_forward.1} parent=11 // pred_check
          %p191 = pneg %p139
        $region26: #{graphormer_forward.1} parent=11 // pred_check_branch
          %193 = sbr.rel (%p191) target = $region28
        $region27: #{graphormer_forward.1} parent=11 // pred_region
          _
        $region28: #{graphormer_forward.1} parent=11 // pred_fallthru
          _
      $region12: #{graphormer_forward.1} parent=5 // pred_fallthru
        _
      %p194 = scmp.lt.s32.totalorder %s15, 2
      // Predicated region
      $region29: #{graphormer_forward.1} parent=5 // pred_check
        %p195 = pneg %p194
      $region30: #{graphormer_forward.1} parent=5 // pred_check_branch
        %197 = sbr.rel (%p195) target = $region32
      $region31: #{graphormer_forward.1} parent=5 // pred_region
        // Predicated region
        $region33: #{graphormer_forward.1} parent=31 // pred_check
          %p198 = pneg %p49
        $region34: #{graphormer_forward.1} parent=31 // pred_check_branch
          %200 = sbr.rel (%p198) target = $region36
        $region35: #{graphormer_forward.1} parent=31 // pred_region
          %s201 = sand.u32 %s39, 1
          %s202 = sand.u32 %s39, 1
          %s203 = smul.addr %s202, 256
          %s204 = scalar_lea.vmem [#allocation3], %s203
          %s205 = smul.u32 32, %s23
          %s206 = smul.addr %s205, 2
          %s207 = sadd.s32 %s22, %s206
          %s208 = smul.addr %s207, 8
          %s209 = scalar_lea.vmem %s0, %s208
          // Predicated region
          $region37: #{graphormer_forward.1} parent=35 // pred_check
            _
          $region38: #{graphormer_forward.1} parent=35 // pred_check_branch
            %211 = sbr.rel (0) target = $region40
          $region39: #{graphormer_forward.1} parent=35 // pred_region
            // Predicated region
            $region41: #{graphormer_forward.1} parent=39 // pred_check
              _
            $region42: #{graphormer_forward.1} parent=39 // pred_check_branch
              %213 = sbr.rel (0) target = $region44
            $region43: #{graphormer_forward.1} parent=39 // pred_region
              // Predicated region
              $region56: #{graphormer_forward.1} parent=43 // pred_check
                _
              $region57: #{graphormer_forward.1} parent=43 // pred_check_branch
                %291 = sbr.rel (0) target = $region59
              $region58: #{graphormer_forward.1} parent=43 // pred_region
                loop: start=0, step=1, limit=1
                $region60: #{graphormer_forward.1} parent=58 // loop_pre_header
                  _
                $region61: #{graphormer_forward.1} parent=58 // loop_header
                  %s293 = sphi 0, %s297
                  %p294 = scmp.ge.s32.totalorder %s293, 1
                  %s298 = sphi %s209, %s209
                  %s299 = sphi %s204, %s204
                $region62: #{graphormer_forward.1} parent=58 // loop_header_branch
                  %296 = sbr.rel (%p294) target = $region66
                $region63: #{graphormer_forward.1} parent=58 // loop_body
                  %v300 = vld [vmem:[%s298] sm:$0xff]
                  %301 = vst [vmem:[%s299] sm:$0xff] %v300
                  %v302 = vld [vmem:[%s298 + $0x10] sm:$0xff]
                  %303 = vst [vmem:[%s299 + $0x8] sm:$0xff] %v302
                  %v304 = vld [vmem:[%s298 + $0x20] sm:$0xff]
                  %305 = vst [vmem:[%s299 + $0x10] sm:$0xff] %v304
                  %v306 = vld [vmem:[%s298 + $0x30] sm:$0xff]
                  %307 = vst [vmem:[%s299 + $0x18] sm:$0xff] %v306
                  %v308 = vld [vmem:[%s298 + $0x40] sm:$0xff]
                  %309 = vst [vmem:[%s299 + $0x20] sm:$0xff] %v308
                  %v310 = vld [vmem:[%s298 + $0x50] sm:$0xff]
                  %311 = vst [vmem:[%s299 + $0x28] sm:$0xff] %v310
                  %v312 = vld [vmem:[%s298 + $0x60] sm:$0xff]
                  %313 = vst [vmem:[%s299 + $0x30] sm:$0xff] %v312
                  %v314 = vld [vmem:[%s298 + $0x70] sm:$0xff]
                  %315 = vst [vmem:[%s299 + $0x38] sm:$0xff] %v314
                  %v316 = vld [vmem:[%s298 + $0x80] sm:$0xff]
                  %317 = vst [vmem:[%s299 + $0x40] sm:$0xff] %v316
                  %v318 = vld [vmem:[%s298 + $0x90] sm:$0xff]
                  %319 = vst [vmem:[%s299 + $0x48] sm:$0xff] %v318
                  %v320 = vld [vmem:[%s298 + $0xa0] sm:$0xff]
                  %321 = vst [vmem:[%s299 + $0x50] sm:$0xff] %v320
                  %v322 = vld [vmem:[%s298 + $0xb0] sm:$0xff]
                  %323 = vst [vmem:[%s299 + $0x58] sm:$0xff] %v322
                  %v324 = vld [vmem:[%s298 + $0xc0] sm:$0xff]
                  %325 = vst [vmem:[%s299 + $0x60] sm:$0xff] %v324
                  %v326 = vld [vmem:[%s298 + $0xd0] sm:$0xff]
                  %327 = vst [vmem:[%s299 + $0x68] sm:$0xff] %v326
                  %v328 = vld [vmem:[%s298 + $0xe0] sm:$0xff]
                  %329 = vst [vmem:[%s299 + $0x70] sm:$0xff] %v328
                  %v330 = vld [vmem:[%s298 + $0xf0] sm:$0xff]
                  %331 = vst [vmem:[%s299 + $0x78] sm:$0xff] %v330
                  %v332 = vld [vmem:[%s298 + $0x100] sm:$0xff]
                  %333 = vst [vmem:[%s299 + $0x80] sm:$0xff] %v332
                  %v334 = vld [vmem:[%s298 + $0x110] sm:$0xff]
                  %335 = vst [vmem:[%s299 + $0x88] sm:$0xff] %v334
                  %v336 = vld [vmem:[%s298 + $0x120] sm:$0xff]
                  %337 = vst [vmem:[%s299 + $0x90] sm:$0xff] %v336
                  %v338 = vld [vmem:[%s298 + $0x130] sm:$0xff]
                  %339 = vst [vmem:[%s299 + $0x98] sm:$0xff] %v338
                  %v340 = vld [vmem:[%s298 + $0x140] sm:$0xff]
                  %341 = vst [vmem:[%s299 + $0xa0] sm:$0xff] %v340
                  %v342 = vld [vmem:[%s298 + $0x150] sm:$0xff]
                  %343 = vst [vmem:[%s299 + $0xa8] sm:$0xff] %v342
                  %v344 = vld [vmem:[%s298 + $0x160] sm:$0xff]
                  %345 = vst [vmem:[%s299 + $0xb0] sm:$0xff] %v344
                  %v346 = vld [vmem:[%s298 + $0x170] sm:$0xff]
                  %347 = vst [vmem:[%s299 + $0xb8] sm:$0xff] %v346
                  %v348 = vld [vmem:[%s298 + $0x180] sm:$0xff]
                  %349 = vst [vmem:[%s299 + $0xc0] sm:$0xff] %v348
                  %v350 = vld [vmem:[%s298 + $0x190] sm:$0xff]
                  %351 = vst [vmem:[%s299 + $0xc8] sm:$0xff] %v350
                  %v352 = vld [vmem:[%s298 + $0x1a0] sm:$0xff]
                  %353 = vst [vmem:[%s299 + $0xd0] sm:$0xff] %v352
                  %v354 = vld [vmem:[%s298 + $0x1b0] sm:$0xff]
                  %355 = vst [vmem:[%s299 + $0xd8] sm:$0xff] %v354
                  %v356 = vld [vmem:[%s298 + $0x1c0] sm:$0xff]
                  %357 = vst [vmem:[%s299 + $0xe0] sm:$0xff] %v356
                  %v358 = vld [vmem:[%s298 + $0x1d0] sm:$0xff]
                  %359 = vst [vmem:[%s299 + $0xe8] sm:$0xff] %v358
                  %v360 = vld [vmem:[%s298 + $0x1e0] sm:$0xff]
                  %361 = vst [vmem:[%s299 + $0xf0] sm:$0xff] %v360
                  %v362 = vld [vmem:[%s298 + $0x1f0] sm:$0xff]
                  %363 = vst [vmem:[%s299 + $0xf8] sm:$0xff] %v362
                $region64: #{graphormer_forward.1} parent=58 // loop_footer
                  %s297 = sadd.s32 1, %s293
                $region65: #{graphormer_forward.1} parent=58 // loop_footer_branch
                  %292 = sbr.rel target = $region61
                $region66: #{graphormer_forward.1} parent=58 // loop_exit
                  _
              $region59: #{graphormer_forward.1} parent=43 // pred_fallthru
                _
              // Predicated region
              $region67: #{graphormer_forward.1} parent=43 // pred_check
                _
              $region68: #{graphormer_forward.1} parent=43 // pred_check_branch
                %365 = sbr.rel target = $region70
              $region69: #{graphormer_forward.1} parent=43 // pred_region
                _
              $region70: #{graphormer_forward.1} parent=43 // pred_fallthru
                _
            $region44: #{graphormer_forward.1} parent=39 // pred_fallthru
              _
            // Predicated region
            $region45: #{graphormer_forward.1} parent=39 // pred_check
              _
            $region46: #{graphormer_forward.1} parent=39 // pred_check_branch
              %215 = sbr.rel target = $region48
            $region47: #{graphormer_forward.1} parent=39 // pred_region
              %s217 = ssub.s32 256, 1
              loop: start=0, step=1, limit=1
              $region49: #{graphormer_forward.1} parent=47 // loop_pre_header
                _
              $region50: #{graphormer_forward.1} parent=47 // loop_header
                %s219 = sphi 0, %s223
                %p220 = scmp.ge.s32.totalorder %s219, 1
                %s224 = sphi %s209, %s209
                %s225 = sphi %s204, %s204
              $region51: #{graphormer_forward.1} parent=47 // loop_header_branch
                %222 = sbr.rel (%p220) target = $region55
              $region52: #{graphormer_forward.1} parent=47 // loop_body
                %v226 = vld [vmem:[%s224] sm:%s217]
                %227 = vst [vmem:[%s225] sm:%s217] %v226
                %v228 = vld [vmem:[%s224 + $0x10] sm:%s217]
                %229 = vst [vmem:[%s225 + $0x8] sm:%s217] %v228
                %v230 = vld [vmem:[%s224 + $0x20] sm:%s217]
                %231 = vst [vmem:[%s225 + $0x10] sm:%s217] %v230
                %v232 = vld [vmem:[%s224 + $0x30] sm:%s217]
                %233 = vst [vmem:[%s225 + $0x18] sm:%s217] %v232
                %v234 = vld [vmem:[%s224 + $0x40] sm:%s217]
                %235 = vst [vmem:[%s225 + $0x20] sm:%s217] %v234
                %v236 = vld [vmem:[%s224 + $0x50] sm:%s217]
                %237 = vst [vmem:[%s225 + $0x28] sm:%s217] %v236
                %v238 = vld [vmem:[%s224 + $0x60] sm:%s217]
                %239 = vst [vmem:[%s225 + $0x30] sm:%s217] %v238
                %v240 = vld [vmem:[%s224 + $0x70] sm:%s217]
                %241 = vst [vmem:[%s225 + $0x38] sm:%s217] %v240
                %v242 = vld [vmem:[%s224 + $0x80] sm:%s217]
                %243 = vst [vmem:[%s225 + $0x40] sm:%s217] %v242
                %v244 = vld [vmem:[%s224 + $0x90] sm:%s217]
                %245 = vst [vmem:[%s225 + $0x48] sm:%s217] %v244
                %v246 = vld [vmem:[%s224 + $0xa0] sm:%s217]
                %247 = vst [vmem:[%s225 + $0x50] sm:%s217] %v246
                %v248 = vld [vmem:[%s224 + $0xb0] sm:%s217]
                %249 = vst [vmem:[%s225 + $0x58] sm:%s217] %v248
                %v250 = vld [vmem:[%s224 + $0xc0] sm:%s217]
                %251 = vst [vmem:[%s225 + $0x60] sm:%s217] %v250
                %v252 = vld [vmem:[%s224 + $0xd0] sm:%s217]
                %253 = vst [vmem:[%s225 + $0x68] sm:%s217] %v252
                %v254 = vld [vmem:[%s224 + $0xe0] sm:%s217]
                %255 = vst [vmem:[%s225 + $0x70] sm:%s217] %v254
                %v256 = vld [vmem:[%s224 + $0xf0] sm:%s217]
                %257 = vst [vmem:[%s225 + $0x78] sm:%s217] %v256
                %v258 = vld [vmem:[%s224 + $0x100] sm:%s217]
                %259 = vst [vmem:[%s225 + $0x80] sm:%s217] %v258
                %v260 = vld [vmem:[%s224 + $0x110] sm:%s217]
                %261 = vst [vmem:[%s225 + $0x88] sm:%s217] %v260
                %v262 = vld [vmem:[%s224 + $0x120] sm:%s217]
                %263 = vst [vmem:[%s225 + $0x90] sm:%s217] %v262
                %v264 = vld [vmem:[%s224 + $0x130] sm:%s217]
                %265 = vst [vmem:[%s225 + $0x98] sm:%s217] %v264
                %v266 = vld [vmem:[%s224 + $0x140] sm:%s217]
                %267 = vst [vmem:[%s225 + $0xa0] sm:%s217] %v266
                %v268 = vld [vmem:[%s224 + $0x150] sm:%s217]
                %269 = vst [vmem:[%s225 + $0xa8] sm:%s217] %v268
                %v270 = vld [vmem:[%s224 + $0x160] sm:%s217]
                %271 = vst [vmem:[%s225 + $0xb0] sm:%s217] %v270
                %v272 = vld [vmem:[%s224 + $0x170] sm:%s217]
                %273 = vst [vmem:[%s225 + $0xb8] sm:%s217] %v272
                %v274 = vld [vmem:[%s224 + $0x180] sm:%s217]
                %275 = vst [vmem:[%s225 + $0xc0] sm:%s217] %v274
                %v276 = vld [vmem:[%s224 + $0x190] sm:%s217]
                %277 = vst [vmem:[%s225 + $0xc8] sm:%s217] %v276
                %v278 = vld [vmem:[%s224 + $0x1a0] sm:%s217]
                %279 = vst [vmem:[%s225 + $0xd0] sm:%s217] %v278
                %v280 = vld [vmem:[%s224 + $0x1b0] sm:%s217]
                %281 = vst [vmem:[%s225 + $0xd8] sm:%s217] %v280
                %v282 = vld [vmem:[%s224 + $0x1c0] sm:%s217]
                %283 = vst [vmem:[%s225 + $0xe0] sm:%s217] %v282
                %v284 = vld [vmem:[%s224 + $0x1d0] sm:%s217]
                %285 = vst [vmem:[%s225 + $0xe8] sm:%s217] %v284
                %v286 = vld [vmem:[%s224 + $0x1e0] sm:%s217]
                %287 = vst [vmem:[%s225 + $0xf0] sm:%s217] %v286
                %v288 = vld [vmem:[%s224 + $0x1f0] sm:%s217]
                %289 = vst [vmem:[%s225 + $0xf8] sm:%s217] %v288
              $region53: #{graphormer_forward.1} parent=47 // loop_footer
                %s223 = sadd.s32 1, %s219
              $region54: #{graphormer_forward.1} parent=47 // loop_footer_branch
                %218 = sbr.rel target = $region50
              $region55: #{graphormer_forward.1} parent=47 // loop_exit
                _
            $region48: #{graphormer_forward.1} parent=39 // pred_fallthru
              _
          $region40: #{graphormer_forward.1} parent=35 // pred_fallthru
            _
          %366 = vnop
        $region36: #{graphormer_forward.1} parent=31 // pred_fallthru
          _
      $region32: #{graphormer_forward.1} parent=5 // pred_fallthru
        _
      %p367 = scmp.le.s32.totalorder 1, %s15
      %p368 = scmp.lt.s32.totalorder %s15, 3
      %p369 = pnand %p367, %p368
      %p370 = pneg %p369
      // Predicated region
      $region71: #{graphormer_forward.1} parent=5 // pred_check
        _
      $region72: #{graphormer_forward.1} parent=5 // pred_check_branch
        %372 = sbr.rel (%p369) target = $region74
      $region73: #{graphormer_forward.1} parent=5 // pred_region
        %s373 = ssub.s32 %s15, 1
        %s374 = sand.u32 %s42, 1
        %s375 = sand.u32 %s42, 1
        %s376 = smul.addr %s375, 256
        %s377 = scalar_lea.vmem [#allocation3], %s376
        // Predicated region
        $region75: #{graphormer_forward.1} parent=73 // pred_check
          %p378 = pneg %p55
        $region76: #{graphormer_forward.1} parent=73 // pred_check_branch
          %380 = sbr.rel (%p378) target = $region78
        $region77: #{graphormer_forward.1} parent=73 // pred_region
          _
        $region78: #{graphormer_forward.1} parent=73 // pred_fallthru
          _
        %s381 = sand.u32 %s42, 1
        %s382 = sand.u32 %s42, 1
        %s383 = smul.addr %s382, 256
        %s384 = scalar_lea.vmem [#allocation3], %s383
        %p385 = pneg %p55
        %p386 = pneg %p52
        %p387 = pneg %p76
        %p388 = pneg %p73
        %p389 = pneg %p97
        %p390 = pneg %p94
        %p391 = pneg %p118
        %p392 = pneg %p115
        %p393 = pneg %p139
        %p394 = pneg %p136
        %p395 = pneg %p167
        %p396 = pneg %p164
        %s397 = sand.u32 %s154, 1
        %s398 = scalar_lea.sflag [#allocation5], %s397
        %s399 = sand.u32 %s154, 1
        %s400 = smul.addr %s399, 128
        %s401 = scalar_lea.vmem [#allocation4], %s400
        %s402 = smul.u32 32, %s25
        %s403 = smul.u32 32, %s25
        %v405 = vld [vmem:[%s377] sm:$0xff]
        %v406 = vld [vmem:[%s377 + $0x8] sm:$0xff]
        %v407 = vld [vmem:[%s377 + $0x10] sm:$0xff]
        %v408 = vld [vmem:[%s377 + $0x18] sm:$0xff]
        %v409 = vld [vmem:[%s377 + $0x20] sm:$0xff]
        %v410 = vld [vmem:[%s377 + $0x28] sm:$0xff]
        %v411 = vld [vmem:[%s377 + $0x30] sm:$0xff]
        %v412 = vld [vmem:[%s377 + $0x38] sm:$0xff]
        %v413 = vld [vmem:[%s377 + $0x40] sm:$0xff]
        %v414 = vld [vmem:[%s377 + $0x48] sm:$0xff]
        %v415 = vld [vmem:[%s377 + $0x50] sm:$0xff]
        %v416 = vld [vmem:[%s377 + $0x58] sm:$0xff]
        %v417 = vld [vmem:[%s377 + $0x60] sm:$0xff]
        %v418 = vld [vmem:[%s377 + $0x68] sm:$0xff]
        %v419 = vld [vmem:[%s377 + $0x70] sm:$0xff]
        %v420 = vld [vmem:[%s377 + $0x78] sm:$0xff]
        %v421 = vld [vmem:[%s377 + $0x80] sm:$0xff]
        %v422 = vld [vmem:[%s377 + $0x88] sm:$0xff]
        %v423 = vld [vmem:[%s377 + $0x90] sm:$0xff]
        %v424 = vld [vmem:[%s377 + $0x98] sm:$0xff]
        %v425 = vld [vmem:[%s377 + $0xa0] sm:$0xff]
        %v426 = vld [vmem:[%s377 + $0xa8] sm:$0xff]
        %v427 = vld [vmem:[%s377 + $0xb0] sm:$0xff]
        %v428 = vld [vmem:[%s377 + $0xb8] sm:$0xff]
        %v429 = vld [vmem:[%s377 + $0xc0] sm:$0xff]
        %v430 = vld [vmem:[%s377 + $0xc8] sm:$0xff]
        %v431 = vld [vmem:[%s377 + $0xd0] sm:$0xff]
        %v432 = vld [vmem:[%s377 + $0xd8] sm:$0xff]
        %v433 = vld [vmem:[%s377 + $0xe0] sm:$0xff]
        %v434 = vld [vmem:[%s377 + $0xe8] sm:$0xff]
        %v435 = vld [vmem:[%s377 + $0xf0] sm:$0xff]
        %v436 = vld [vmem:[%s377 + $0xf8] sm:$0xff]
        %v437 = vpack.c.bf16 %v406, %v405
        %v438 = vpack.c.bf16 %v408, %v407
        %v439 = vpack.c.bf16 %v410, %v409
        %v440 = vpack.c.bf16 %v412, %v411
        %v441 = vpack.c.bf16 %v414, %v413
        %v442 = vpack.c.bf16 %v416, %v415
        %v443 = vpack.c.bf16 %v418, %v417
        %v444 = vpack.c.bf16 %v420, %v419
        %v445 = vpack.c.bf16 %v422, %v421
        %v446 = vpack.c.bf16 %v424, %v423
        %v447 = vpack.c.bf16 %v426, %v425
        %v448 = vpack.c.bf16 %v428, %v427
        %v449 = vpack.c.bf16 %v430, %v429
        %v450 = vpack.c.bf16 %v432, %v431
        %v451 = vpack.c.bf16 %v434, %v433
        %v452 = vpack.c.bf16 %v436, %v435
        %v453 = vld [vmem:[%s1] sm:$0xf]
        %v454 = vld [vmem:[%s1 + $0x4] sm:$0xf]
        %v455 = vld [vmem:[%s1 + $0x8] sm:$0xf]
        %v456 = vld [vmem:[%s1 + $0xc] sm:$0xf]
        %v457 = vld [vmem:[%s1 + $0x10] sm:$0xf]
        %v458 = vld [vmem:[%s1 + $0x14] sm:$0xf]
        %v459 = vld [vmem:[%s1 + $0x18] sm:$0xf]
        %v460 = vld [vmem:[%s1 + $0x1c] sm:$0xf]
        %v461 = vld [vmem:[%s1 + $0x20] sm:$0xf]
        %v462 = vld [vmem:[%s1 + $0x24] sm:$0xf]
        %v463 = vld [vmem:[%s1 + $0x28] sm:$0xf]
        %v464 = vld [vmem:[%s1 + $0x2c] sm:$0xf]
        %v465 = vld [vmem:[%s1 + $0x30] sm:$0xf]
        %v466 = vld [vmem:[%s1 + $0x34] sm:$0xf]
        %v467 = vld [vmem:[%s1 + $0x38] sm:$0xf]
        %v468 = vld [vmem:[%s1 + $0x3c] sm:$0xf]
        %v469 = vld [vmem:[%s2] sm:$0x1]
        %v470 = vlaneseq
        %v471 = vshrl.u32 %v470, 7
        %v472 = vsub.s32 0, %v471
        %v473 = vrot.slane %v469, %v472
        %v490 = vunpack.c.l.b16 %v453
        %v491 = vunpack.c.l.b16 %v454
        %v492 = vunpack.c.l.b16 %v455
        %v493 = vunpack.c.l.b16 %v456
        %v494 = vunpack.c.l.b16 %v457
        %v495 = vunpack.c.l.b16 %v458
        %v496 = vunpack.c.l.b16 %v459
        %v497 = vunpack.c.l.b16 %v460
        %v498 = vunpack.c.l.b16 %v461
        %v499 = vunpack.c.l.b16 %v462
        %v500 = vunpack.c.l.b16 %v463
        %v501 = vunpack.c.l.b16 %v464
        %v502 = vunpack.c.l.b16 %v465
        %v503 = vunpack.c.l.b16 %v466
        %v504 = vunpack.c.l.b16 %v467
        %v505 = vunpack.c.l.b16 %v468
        %v506 = vpack.c.b16 %v491, %v490
        %v507 = vpack.c.b16 %v493, %v492
        %v508 = vpack.c.b16 %v495, %v494
        %v509 = vpack.c.b16 %v497, %v496
        %v510 = vpack.c.b16 %v499, %v498
        %v511 = vpack.c.b16 %v501, %v500
        %v512 = vpack.c.b16 %v503, %v502
        %v513 = vpack.c.b16 %v505, %v504
        %522 = vmatprep.subr.bf16.mxu0 0
        %523 = vmatpush1.bf16.msra.mxu0 %v513
        %524 = vmatprep.subr.bf16.mxu0 0
        %525 = vmatpush1.bf16.msra.mxu0 %v512
        %526 = vmatprep.subr.bf16.mxu0 0
        %527 = vmatpush1.bf16.msra.mxu0 %v511
        %528 = vmatprep.subr.bf16.mxu0 0
        %529 = vmatpush1.bf16.msra.mxu0 %v510
        %530 = vmatprep.subr.bf16.mxu0 0
        %531 = vmatpush1.bf16.msra.mxu0 %v509
        %532 = vmatprep.subr.bf16.mxu0 0
        %533 = vmatpush1.bf16.msra.mxu0 %v508
        %534 = vmatprep.subr.bf16.mxu0 0
        %535 = vmatpush1.bf16.msra.mxu0 %v507
        %536 = vmatprep.subr.bf16.mxu0 0
        %537 = vmatpush1.bf16.msra.mxu0 %v506
        %538 = vmatprep.subr.bf16.mxu0 0
        %539 = vmatpush2.bf16.msra.mxu0 0
        %540 = vmatprep.subr.bf16.mxu0 0
        %541 = vmatpush2.bf16.msra.mxu0 0
        %542 = vmatprep.subr.bf16.mxu0 0
        %543 = vmatpush2.bf16.msra.mxu0 0
        %544 = vmatprep.subr.bf16.mxu0 0
        %545 = vmatpush2.bf16.msra.mxu0 0
        %546 = vmatprep.subr.bf16.mxu0 0
        %547 = vmatpush2.bf16.msra.mxu0 0
        %548 = vmatprep.subr.bf16.mxu0 0
        %549 = vmatpush2.bf16.msra.mxu0 0
        %550 = vmatprep.subr.bf16.mxu0 0
        %551 = vmatpush2.bf16.msra.mxu0 0
        %552 = vmatprep.subr.bf16.mxu0 0
        %553 = vmatpush2.bf16.msra.mxu0 0
        %554 = vmatprep.mubr.bf16.mxu0 0
        %555 = vmatmul.mubr.bf16.gmra.mxu0 %v437
        %v556 = vpop.f32.mrf.mxu0
        %v557 = vadd.f32 %v473, %v556
        %v558 = vpop.f32.mrf.mxu0
        %v559 = vpop.f32.mrf.mxu0
        %v560 = vadd.f32 %v473, %v559
        %v561 = vpop.f32.mrf.mxu0
        %562 = vmatprep.mubr.bf16.mxu0 0
        %563 = vmatmul.mubr.bf16.gmra.mxu0 %v438
        %v564 = vpop.f32.mrf.mxu0
        %v565 = vadd.f32 %v473, %v564
        %v566 = vpop.f32.mrf.mxu0
        %v567 = vpop.f32.mrf.mxu0
        %v568 = vadd.f32 %v473, %v567
        %v569 = vpop.f32.mrf.mxu0
        %570 = vmatprep.mubr.bf16.mxu0 0
        %571 = vmatmul.mubr.bf16.gmra.mxu0 %v439
        %v572 = vpop.f32.mrf.mxu0
        %v573 = vadd.f32 %v473, %v572
        %v574 = vpop.f32.mrf.mxu0
        %v575 = vpop.f32.mrf.mxu0
        %v576 = vadd.f32 %v473, %v575
        %v577 = vpop.f32.mrf.mxu0
        %578 = vmatprep.mubr.bf16.mxu0 0
        %579 = vmatmul.mubr.bf16.gmra.mxu0 %v440
        %v580 = vpop.f32.mrf.mxu0
        %v581 = vadd.f32 %v473, %v580
        %v582 = vpop.f32.mrf.mxu0
        %v583 = vpop.f32.mrf.mxu0
        %v584 = vadd.f32 %v473, %v583
        %v585 = vpop.f32.mrf.mxu0
        %586 = vmatprep.mubr.bf16.mxu0 0
        %587 = vmatmul.mubr.bf16.gmra.mxu0 %v441
        %v588 = vpop.f32.mrf.mxu0
        %v589 = vadd.f32 %v473, %v588
        %v590 = vpop.f32.mrf.mxu0
        %v591 = vpop.f32.mrf.mxu0
        %v592 = vadd.f32 %v473, %v591
        %v593 = vpop.f32.mrf.mxu0
        %594 = vmatprep.mubr.bf16.mxu0 0
        %595 = vmatmul.mubr.bf16.gmra.mxu0 %v442
        %v596 = vpop.f32.mrf.mxu0
        %v597 = vadd.f32 %v473, %v596
        %v598 = vpop.f32.mrf.mxu0
        %v599 = vpop.f32.mrf.mxu0
        %v600 = vadd.f32 %v473, %v599
        %v601 = vpop.f32.mrf.mxu0
        %602 = vmatprep.mubr.bf16.mxu0 0
        %603 = vmatmul.mubr.bf16.gmra.mxu0 %v443
        %v604 = vpop.f32.mrf.mxu0
        %v605 = vadd.f32 %v473, %v604
        %v606 = vpop.f32.mrf.mxu0
        %v607 = vpop.f32.mrf.mxu0
        %v608 = vadd.f32 %v473, %v607
        %v609 = vpop.f32.mrf.mxu0
        %610 = vmatprep.mubr.bf16.mxu0 0
        %611 = vmatmul.mubr.bf16.gmra.mxu0 %v444
        %v612 = vpop.f32.mrf.mxu0
        %v613 = vadd.f32 %v473, %v612
        %v614 = vpop.f32.mrf.mxu0
        %v615 = vpop.f32.mrf.mxu0
        %v616 = vadd.f32 %v473, %v615
        %v617 = vpop.f32.mrf.mxu0
        %618 = vmatprep.mubr.bf16.mxu0 0
        %619 = vmatmul.mubr.bf16.gmra.mxu0 %v445
        %v620 = vpop.f32.mrf.mxu0
        %v621 = vadd.f32 %v473, %v620
        %v622 = vpop.f32.mrf.mxu0
        %v623 = vpop.f32.mrf.mxu0
        %v624 = vadd.f32 %v473, %v623
        %v625 = vpop.f32.mrf.mxu0
        %626 = vmatprep.mubr.bf16.mxu0 0
        %627 = vmatmul.mubr.bf16.gmra.mxu0 %v446
        %v628 = vpop.f32.mrf.mxu0
        %v629 = vadd.f32 %v473, %v628
        %v630 = vpop.f32.mrf.mxu0
        %v631 = vpop.f32.mrf.mxu0
        %v632 = vadd.f32 %v473, %v631
        %v633 = vpop.f32.mrf.mxu0
        %634 = vmatprep.mubr.bf16.mxu0 0
        %635 = vmatmul.mubr.bf16.gmra.mxu0 %v447
        %v636 = vpop.f32.mrf.mxu0
        %v637 = vadd.f32 %v473, %v636
        %v638 = vpop.f32.mrf.mxu0
        %v639 = vpop.f32.mrf.mxu0
        %v640 = vadd.f32 %v473, %v639
        %v641 = vpop.f32.mrf.mxu0
        %642 = vmatprep.mubr.bf16.mxu0 0
        %643 = vmatmul.mubr.bf16.gmra.mxu0 %v448
        %v644 = vpop.f32.mrf.mxu0
        %v645 = vadd.f32 %v473, %v644
        %v646 = vpop.f32.mrf.mxu0
        %v647 = vpop.f32.mrf.mxu0
        %v648 = vadd.f32 %v473, %v647
        %v649 = vpop.f32.mrf.mxu0
        %650 = vmatprep.mubr.bf16.mxu0 0
        %651 = vmatmul.mubr.bf16.gmra.mxu0 %v449
        %v652 = vpop.f32.mrf.mxu0
        %v653 = vadd.f32 %v473, %v652
        %v654 = vpop.f32.mrf.mxu0
        %v655 = vpop.f32.mrf.mxu0
        %v656 = vadd.f32 %v473, %v655
        %v657 = vpop.f32.mrf.mxu0
        %658 = vmatprep.mubr.bf16.mxu0 0
        %659 = vmatmul.mubr.bf16.gmra.mxu0 %v450
        %v660 = vpop.f32.mrf.mxu0
        %v661 = vadd.f32 %v473, %v660
        %v662 = vpop.f32.mrf.mxu0
        %v663 = vpop.f32.mrf.mxu0
        %v664 = vadd.f32 %v473, %v663
        %v665 = vpop.f32.mrf.mxu0
        %666 = vmatprep.mubr.bf16.mxu0 0
        %667 = vmatmul.mubr.bf16.gmra.mxu0 %v451
        %v668 = vpop.f32.mrf.mxu0
        %v669 = vadd.f32 %v473, %v668
        %v670 = vpop.f32.mrf.mxu0
        %v671 = vpop.f32.mrf.mxu0
        %v672 = vadd.f32 %v473, %v671
        %v673 = vpop.f32.mrf.mxu0
        %674 = vmatprep.mubr.bf16.mxu0 0
        %675 = vmatmul.mubr.bf16.gmra.mxu0 %v452
        %v676 = vpop.f32.mrf.mxu0
        %v677 = vadd.f32 %v473, %v676
        %v678 = vpop.f32.mrf.mxu0
        %v679 = vpop.f32.mrf.mxu0
        %v680 = vadd.f32 %v473, %v679
        %v681 = vpop.f32.mrf.mxu0
        %682 = vdwg.mxu0
        %v683 = vmul.f32 %v557, 0.5
        %v684 = vmul.f32 %v560, 0.5
        %v685 = vmul.f32 %v565, 0.5
        %v686 = vmul.f32 %v568, 0.5
        %v687 = vmul.f32 %v573, 0.5
        %v688 = vmul.f32 %v576, 0.5
        %v689 = vmul.f32 %v581, 0.5
        %v690 = vmul.f32 %v584, 0.5
        %v691 = vmul.f32 %v589, 0.5
        %v692 = vmul.f32 %v592, 0.5
        %v693 = vmul.f32 %v597, 0.5
        %v694 = vmul.f32 %v600, 0.5
        %v695 = vmul.f32 %v605, 0.5
        %v696 = vmul.f32 %v608, 0.5
        %v697 = vmul.f32 %v613, 0.5
        %v698 = vmul.f32 %v616, 0.5
        %v699 = vmul.f32 %v621, 0.5
        %v700 = vmul.f32 %v624, 0.5
        %v701 = vmul.f32 %v629, 0.5
        %v702 = vmul.f32 %v632, 0.5
        %v703 = vmul.f32 %v637, 0.5
        %v704 = vmul.f32 %v640, 0.5
        %v705 = vmul.f32 %v645, 0.5
        %v706 = vmul.f32 %v648, 0.5
        %v707 = vmul.f32 %v653, 0.5
        %v708 = vmul.f32 %v656, 0.5
        %v709 = vmul.f32 %v661, 0.5
        %v710 = vmul.f32 %v664, 0.5
        %v711 = vmul.f32 %v669, 0.5
        %v712 = vmul.f32 %v672, 0.5
        %v713 = vmul.f32 %v677, 0.5
        %v714 = vmul.f32 %v680, 0.5
        %v715 = vmul.f32 %v557, 0.70710677
        %v716 = vmul.f32 %v560, 0.70710677
        %v717 = vmul.f32 %v565, 0.70710677
        %v718 = vmul.f32 %v568, 0.70710677
        %v719 = vmul.f32 %v573, 0.70710677
        %v720 = vmul.f32 %v576, 0.70710677
        %v721 = vmul.f32 %v581, 0.70710677
        %v722 = vmul.f32 %v584, 0.70710677
        %v723 = vmul.f32 %v589, 0.70710677
        %v724 = vmul.f32 %v592, 0.70710677
        %v725 = vmul.f32 %v597, 0.70710677
        %v726 = vmul.f32 %v600, 0.70710677
        %v727 = vmul.f32 %v605, 0.70710677
        %v728 = vmul.f32 %v608, 0.70710677
        %v729 = vmul.f32 %v613, 0.70710677
        %v730 = vmul.f32 %v616, 0.70710677
        %v731 = vmul.f32 %v621, 0.70710677
        %v732 = vmul.f32 %v624, 0.70710677
        %v733 = vmul.f32 %v629, 0.70710677
        %v734 = vmul.f32 %v632, 0.70710677
        %v735 = vmul.f32 %v637, 0.70710677
        %v736 = vmul.f32 %v640, 0.70710677
        %v737 = vmul.f32 %v645, 0.70710677
        %v738 = vmul.f32 %v648, 0.70710677
        %v739 = vmul.f32 %v653, 0.70710677
        %v740 = vmul.f32 %v656, 0.70710677
        %v741 = vmul.f32 %v661, 0.70710677
        %v742 = vmul.f32 %v664, 0.70710677
        %v743 = vmul.f32 %v669, 0.70710677
        %v744 = vmul.f32 %v672, 0.70710677
        %v745 = vmul.f32 %v677, 0.70710677
        %v746 = vmul.f32 %v680, 0.70710677
        %v747 = verf.f32.pop %v715
        %v748 = verf.f32.pop %v716
        %v749 = verf.f32.pop %v717
        %v750 = verf.f32.pop %v718
        %v751 = verf.f32.pop %v719
        %v752 = verf.f32.pop %v720
        %v753 = verf.f32.pop %v721
        %v754 = verf.f32.pop %v722
        %v755 = verf.f32.pop %v723
        %v756 = verf.f32.pop %v724
        %v757 = verf.f32.pop %v725
        %v758 = verf.f32.pop %v726
        %v759 = verf.f32.pop %v727
        %v760 = verf.f32.pop %v728
        %v761 = verf.f32.pop %v729
        %v762 = verf.f32.pop %v730
        %v763 = verf.f32.pop %v731
        %v764 = verf.f32.pop %v732
        %v765 = verf.f32.pop %v733
        %v766 = verf.f32.pop %v734
        %v767 = verf.f32.pop %v735
        %v768 = verf.f32.pop %v736
        %v769 = verf.f32.pop %v737
        %v770 = verf.f32.pop %v738
        %v771 = verf.f32.pop %v739
        %v772 = verf.f32.pop %v740
        %v773 = verf.f32.pop %v741
        %v774 = verf.f32.pop %v742
        %v775 = verf.f32.pop %v743
        %v776 = verf.f32.pop %v744
        %v777 = verf.f32.pop %v745
        %v778 = verf.f32.pop %v746
        %v779 = vadd.f32 %v747, 1.0
        %v780 = vadd.f32 %v748, 1.0
        %v781 = vadd.f32 %v749, 1.0
        %v782 = vadd.f32 %v750, 1.0
        %v783 = vadd.f32 %v751, 1.0
        %v784 = vadd.f32 %v752, 1.0
        %v785 = vadd.f32 %v753, 1.0
        %v786 = vadd.f32 %v754, 1.0
        %v787 = vadd.f32 %v755, 1.0
        %v788 = vadd.f32 %v756, 1.0
        %v789 = vadd.f32 %v757, 1.0
        %v790 = vadd.f32 %v758, 1.0
        %v791 = vadd.f32 %v759, 1.0
        %v792 = vadd.f32 %v760, 1.0
        %v793 = vadd.f32 %v761, 1.0
        %v794 = vadd.f32 %v762, 1.0
        %v795 = vadd.f32 %v763, 1.0
        %v796 = vadd.f32 %v764, 1.0
        %v797 = vadd.f32 %v765, 1.0
        %v798 = vadd.f32 %v766, 1.0
        %v799 = vadd.f32 %v767, 1.0
        %v800 = vadd.f32 %v768, 1.0
        %v801 = vadd.f32 %v769, 1.0
        %v802 = vadd.f32 %v770, 1.0
        %v803 = vadd.f32 %v771, 1.0
        %v804 = vadd.f32 %v772, 1.0
        %v805 = vadd.f32 %v773, 1.0
        %v806 = vadd.f32 %v774, 1.0
        %v807 = vadd.f32 %v775, 1.0
        %v808 = vadd.f32 %v776, 1.0
        %v809 = vadd.f32 %v777, 1.0
        %v810 = vadd.f32 %v778, 1.0
        %v811 = vmul.f32 %v683, %v779
        %v812 = vmul.f32 %v684, %v780
        %v813 = vmul.f32 %v685, %v781
        %v814 = vmul.f32 %v686, %v782
        %v815 = vmul.f32 %v687, %v783
        %v816 = vmul.f32 %v688, %v784
        %v817 = vmul.f32 %v689, %v785
        %v818 = vmul.f32 %v690, %v786
        %v819 = vmul.f32 %v691, %v787
        %v820 = vmul.f32 %v692, %v788
        %v821 = vmul.f32 %v693, %v789
        %v822 = vmul.f32 %v694, %v790
        %v823 = vmul.f32 %v695, %v791
        %v824 = vmul.f32 %v696, %v792
        %v825 = vmul.f32 %v697, %v793
        %v826 = vmul.f32 %v698, %v794
        %v827 = vmul.f32 %v699, %v795
        %v828 = vmul.f32 %v700, %v796
        %v829 = vmul.f32 %v701, %v797
        %v830 = vmul.f32 %v702, %v798
        %v831 = vmul.f32 %v703, %v799
        %v832 = vmul.f32 %v704, %v800
        %v833 = vmul.f32 %v705, %v801
        %v834 = vmul.f32 %v706, %v802
        %v835 = vmul.f32 %v707, %v803
        %v836 = vmul.f32 %v708, %v804
        %v837 = vmul.f32 %v709, %v805
        %v838 = vmul.f32 %v710, %v806
        %v839 = vmul.f32 %v711, %v807
        %v840 = vmul.f32 %v712, %v808
        %v841 = vmul.f32 %v713, %v809
        %v842 = vmul.f32 %v714, %v810
        %843 = vadd.xlane.f32.xlu0 %v811
        %v844 = vpop.xlane.xlu0 %843
        %845 = vadd.xlane.f32.xlu0 %v812
        %v846 = vpop.xlane.xlu0 %845
        %847 = vadd.xlane.f32.xlu0 %v813
        %v848 = vpop.xlane.xlu0 %847
        %849 = vadd.xlane.f32.xlu0 %v814
        %v850 = vpop.xlane.xlu0 %849
        %851 = vadd.xlane.f32.xlu0 %v815
        %v852 = vpop.xlane.xlu0 %851
        %853 = vadd.xlane.f32.xlu0 %v816
        %v854 = vpop.xlane.xlu0 %853
        %855 = vadd.xlane.f32.xlu0 %v817
        %v856 = vpop.xlane.xlu0 %855
        %857 = vadd.xlane.f32.xlu0 %v818
        %v858 = vpop.xlane.xlu0 %857
        %859 = vadd.xlane.f32.xlu0 %v819
        %v860 = vpop.xlane.xlu0 %859
        %861 = vadd.xlane.f32.xlu0 %v820
        %v862 = vpop.xlane.xlu0 %861
        %863 = vadd.xlane.f32.xlu0 %v821
        %v864 = vpop.xlane.xlu0 %863
        %865 = vadd.xlane.f32.xlu0 %v822
        %v866 = vpop.xlane.xlu0 %865
        %867 = vadd.xlane.f32.xlu0 %v823
        %v868 = vpop.xlane.xlu0 %867
        %869 = vadd.xlane.f32.xlu0 %v824
        %v870 = vpop.xlane.xlu0 %869
        %871 = vadd.xlane.f32.xlu0 %v825
        %v872 = vpop.xlane.xlu0 %871
        %873 = vadd.xlane.f32.xlu0 %v826
        %v874 = vpop.xlane.xlu0 %873
        %875 = vadd.xlane.f32.xlu0 %v827
        %v876 = vpop.xlane.xlu0 %875
        %877 = vadd.xlane.f32.xlu0 %v828
        %v878 = vpop.xlane.xlu0 %877
        %879 = vadd.xlane.f32.xlu0 %v829
        %v880 = vpop.xlane.xlu0 %879
        %881 = vadd.xlane.f32.xlu0 %v830
        %v882 = vpop.xlane.xlu0 %881
        %883 = vadd.xlane.f32.xlu0 %v831
        %v884 = vpop.xlane.xlu0 %883
        %885 = vadd.xlane.f32.xlu0 %v832
        %v886 = vpop.xlane.xlu0 %885
        %887 = vadd.xlane.f32.xlu0 %v833
        %v888 = vpop.xlane.xlu0 %887
        %889 = vadd.xlane.f32.xlu0 %v834
        %v890 = vpop.xlane.xlu0 %889
        %891 = vadd.xlane.f32.xlu0 %v835
        %v892 = vpop.xlane.xlu0 %891
        %893 = vadd.xlane.f32.xlu0 %v836
        %v894 = vpop.xlane.xlu0 %893
        %895 = vadd.xlane.f32.xlu0 %v837
        %v896 = vpop.xlane.xlu0 %895
        %897 = vadd.xlane.f32.xlu0 %v838
        %v898 = vpop.xlane.xlu0 %897
        %899 = vadd.xlane.f32.xlu0 %v839
        %v900 = vpop.xlane.xlu0 %899
        %901 = vadd.xlane.f32.xlu0 %v840
        %v902 = vpop.xlane.xlu0 %901
        %903 = vadd.xlane.f32.xlu0 %v841
        %v904 = vpop.xlane.xlu0 %903
        %905 = vadd.xlane.f32.xlu0 %v842
        %v906 = vpop.xlane.xlu0 %905
        %v907 = vrcp.pop 128.0
        %v908 = vmul.f32 %v844, %v907
        %v909 = vmul.f32 %v846, %v907
        %v910 = vmul.f32 %v848, %v907
        %v911 = vmul.f32 %v850, %v907
        %v912 = vmul.f32 %v852, %v907
        %v913 = vmul.f32 %v854, %v907
        %v914 = vmul.f32 %v856, %v907
        %v915 = vmul.f32 %v858, %v907
        %v916 = vmul.f32 %v860, %v907
        %v917 = vmul.f32 %v862, %v907
        %v918 = vmul.f32 %v864, %v907
        %v919 = vmul.f32 %v866, %v907
        %v920 = vmul.f32 %v868, %v907
        %v921 = vmul.f32 %v870, %v907
        %v922 = vmul.f32 %v872, %v907
        %v923 = vmul.f32 %v874, %v907
        %v924 = vmul.f32 %v876, %v907
        %v925 = vmul.f32 %v878, %v907
        %v926 = vmul.f32 %v880, %v907
        %v927 = vmul.f32 %v882, %v907
        %v928 = vmul.f32 %v884, %v907
        %v929 = vmul.f32 %v886, %v907
        %v930 = vmul.f32 %v888, %v907
        %v931 = vmul.f32 %v890, %v907
        %v932 = vmul.f32 %v892, %v907
        %v933 = vmul.f32 %v894, %v907
        %v934 = vmul.f32 %v896, %v907
        %v935 = vmul.f32 %v898, %v907
        %v936 = vmul.f32 %v900, %v907
        %v937 = vmul.f32 %v902, %v907
        %v938 = vmul.f32 %v904, %v907
        %v939 = vmul.f32 %v906, %v907
        %v940 = vsub.f32 %v811, %v908
        %v941 = vsub.f32 %v812, %v909
        %v942 = vsub.f32 %v813, %v910
        %v943 = vsub.f32 %v814, %v911
        %v944 = vsub.f32 %v815, %v912
        %v945 = vsub.f32 %v816, %v913
        %v946 = vsub.f32 %v817, %v914
        %v947 = vsub.f32 %v818, %v915
        %v948 = vsub.f32 %v819, %v916
        %v949 = vsub.f32 %v820, %v917
        %v950 = vsub.f32 %v821, %v918
        %v951 = vsub.f32 %v822, %v919
        %v952 = vsub.f32 %v823, %v920
        %v953 = vsub.f32 %v824, %v921
        %v954 = vsub.f32 %v825, %v922
        %v955 = vsub.f32 %v826, %v923
        %v956 = vsub.f32 %v827, %v924
        %v957 = vsub.f32 %v828, %v925
        %v958 = vsub.f32 %v829, %v926
        %v959 = vsub.f32 %v830, %v927
        %v960 = vsub.f32 %v831, %v928
        %v961 = vsub.f32 %v832, %v929
        %v962 = vsub.f32 %v833, %v930
        %v963 = vsub.f32 %v834, %v931
        %v964 = vsub.f32 %v835, %v932
        %v965 = vsub.f32 %v836, %v933
        %v966 = vsub.f32 %v837, %v934
        %v967 = vsub.f32 %v838, %v935
        %v968 = vsub.f32 %v839, %v936
        %v969 = vsub.f32 %v840, %v937
        %v970 = vsub.f32 %v841, %v938
        %v971 = vsub.f32 %v842, %v939
        %v972 = vmul.f32 %v940, %v940
        %v973 = vmul.f32 %v941, %v941
        %v974 = vmul.f32 %v942, %v942
        %v975 = vmul.f32 %v943, %v943
        %v976 = vmul.f32 %v944, %v944
        %v977 = vmul.f32 %v945, %v945
        %v978 = vmul.f32 %v946, %v946
        %v979 = vmul.f32 %v947, %v947
        %v980 = vmul.f32 %v948, %v948
        %v981 = vmul.f32 %v949, %v949
        %v982 = vmul.f32 %v950, %v950
        %v983 = vmul.f32 %v951, %v951
        %v984 = vmul.f32 %v952, %v952
        %v985 = vmul.f32 %v953, %v953
        %v986 = vmul.f32 %v954, %v954
        %v987 = vmul.f32 %v955, %v955
        %v988 = vmul.f32 %v956, %v956
        %v989 = vmul.f32 %v957, %v957
        %v990 = vmul.f32 %v958, %v958
        %v991 = vmul.f32 %v959, %v959
        %v992 = vmul.f32 %v960, %v960
        %v993 = vmul.f32 %v961, %v961
        %v994 = vmul.f32 %v962, %v962
        %v995 = vmul.f32 %v963, %v963
        %v996 = vmul.f32 %v964, %v964
        %v997 = vmul.f32 %v965, %v965
        %v998 = vmul.f32 %v966, %v966
        %v999 = vmul.f32 %v967, %v967
        %v1000 = vmul.f32 %v968, %v968
        %v1001 = vmul.f32 %v969, %v969
        %v1002 = vmul.f32 %v970, %v970
        %v1003 = vmul.f32 %v971, %v971
        %1004 = vadd.xlane.f32.xlu0 %v972
        %v1005 = vpop.xlane.xlu0 %1004
        %1006 = vadd.xlane.f32.xlu0 %v973
        %v1007 = vpop.xlane.xlu0 %1006
        %1008 = vadd.xlane.f32.xlu0 %v974
        %v1009 = vpop.xlane.xlu0 %1008
        %1010 = vadd.xlane.f32.xlu0 %v975
        %v1011 = vpop.xlane.xlu0 %1010
        %1012 = vadd.xlane.f32.xlu0 %v976
        %v1013 = vpop.xlane.xlu0 %1012
        %1014 = vadd.xlane.f32.xlu0 %v977
        %v1015 = vpop.xlane.xlu0 %1014
        %1016 = vadd.xlane.f32.xlu0 %v978
        %v1017 = vpop.xlane.xlu0 %1016
        %1018 = vadd.xlane.f32.xlu0 %v979
        %v1019 = vpop.xlane.xlu0 %1018
        %1020 = vadd.xlane.f32.xlu0 %v980
        %v1021 = vpop.xlane.xlu0 %1020
        %1022 = vadd.xlane.f32.xlu0 %v981
        %v1023 = vpop.xlane.xlu0 %1022
        %1024 = vadd.xlane.f32.xlu0 %v982
        %v1025 = vpop.xlane.xlu0 %1024
        %1026 = vadd.xlane.f32.xlu0 %v983
        %v1027 = vpop.xlane.xlu0 %1026
        %1028 = vadd.xlane.f32.xlu0 %v984
        %v1029 = vpop.xlane.xlu0 %1028
        %1030 = vadd.xlane.f32.xlu0 %v985
        %v1031 = vpop.xlane.xlu0 %1030
        %1032 = vadd.xlane.f32.xlu0 %v986
        %v1033 = vpop.xlane.xlu0 %1032
        %1034 = vadd.xlane.f32.xlu0 %v987
        %v1035 = vpop.xlane.xlu0 %1034
        %1036 = vadd.xlane.f32.xlu0 %v988
        %v1037 = vpop.xlane.xlu0 %1036
        %1038 = vadd.xlane.f32.xlu0 %v989
        %v1039 = vpop.xlane.xlu0 %1038
        %1040 = vadd.xlane.f32.xlu0 %v990
        %v1041 = vpop.xlane.xlu0 %1040
        %1042 = vadd.xlane.f32.xlu0 %v991
        %v1043 = vpop.xlane.xlu0 %1042
        %1044 = vadd.xlane.f32.xlu0 %v992
        %v1045 = vpop.xlane.xlu0 %1044
        %1046 = vadd.xlane.f32.xlu0 %v993
        %v1047 = vpop.xlane.xlu0 %1046
        %1048 = vadd.xlane.f32.xlu0 %v994
        %v1049 = vpop.xlane.xlu0 %1048
        %1050 = vadd.xlane.f32.xlu0 %v995
        %v1051 = vpop.xlane.xlu0 %1050
        %1052 = vadd.xlane.f32.xlu0 %v996
        %v1053 = vpop.xlane.xlu0 %1052
        %1054 = vadd.xlane.f32.xlu0 %v997
        %v1055 = vpop.xlane.xlu0 %1054
        %1056 = vadd.xlane.f32.xlu0 %v998
        %v1057 = vpop.xlane.xlu0 %1056
        %1058 = vadd.xlane.f32.xlu0 %v999
        %v1059 = vpop.xlane.xlu0 %1058
        %1060 = vadd.xlane.f32.xlu0 %v1000
        %v1061 = vpop.xlane.xlu0 %1060
        %1062 = vadd.xlane.f32.xlu0 %v1001
        %v1063 = vpop.xlane.xlu0 %1062
        %1064 = vadd.xlane.f32.xlu0 %v1002
        %v1065 = vpop.xlane.xlu0 %1064
        %1066 = vadd.xlane.f32.xlu0 %v1003
        %v1067 = vpop.xlane.xlu0 %1066
        %v1068 = vmul.f32 %v1005, %v907
        %v1069 = vmul.f32 %v1007, %v907
        %v1070 = vmul.f32 %v1009, %v907
        %v1071 = vmul.f32 %v1011, %v907
        %v1072 = vmul.f32 %v1013, %v907
        %v1073 = vmul.f32 %v1015, %v907
        %v1074 = vmul.f32 %v1017, %v907
        %v1075 = vmul.f32 %v1019, %v907
        %v1076 = vmul.f32 %v1021, %v907
        %v1077 = vmul.f32 %v1023, %v907
        %v1078 = vmul.f32 %v1025, %v907
        %v1079 = vmul.f32 %v1027, %v907
        %v1080 = vmul.f32 %v1029, %v907
        %v1081 = vmul.f32 %v1031, %v907
        %v1082 = vmul.f32 %v1033, %v907
        %v1083 = vmul.f32 %v1035, %v907
        %v1084 = vmul.f32 %v1037, %v907
        %v1085 = vmul.f32 %v1039, %v907
        %v1086 = vmul.f32 %v1041, %v907
        %v1087 = vmul.f32 %v1043, %v907
        %v1088 = vmul.f32 %v1045, %v907
        %v1089 = vmul.f32 %v1047, %v907
        %v1090 = vmul.f32 %v1049, %v907
        %v1091 = vmul.f32 %v1051, %v907
        %v1092 = vmul.f32 %v1053, %v907
        %v1093 = vmul.f32 %v1055, %v907
        %v1094 = vmul.f32 %v1057, %v907
        %v1095 = vmul.f32 %v1059, %v907
        %v1096 = vmul.f32 %v1061, %v907
        %v1097 = vmul.f32 %v1063, %v907
        %v1098 = vmul.f32 %v1065, %v907
        %v1099 = vmul.f32 %v1067, %v907
        %v1100 = vadd.f32 %v1068, 1e-05
        %v1101 = vadd.f32 %v1069, 1e-05
        %v1102 = vadd.f32 %v1070, 1e-05
        %v1103 = vadd.f32 %v1071, 1e-05
        %v1104 = vadd.f32 %v1072, 1e-05
        %v1105 = vadd.f32 %v1073, 1e-05
        %v1106 = vadd.f32 %v1074, 1e-05
        %v1107 = vadd.f32 %v1075, 1e-05
        %v1108 = vadd.f32 %v1076, 1e-05
        %v1109 = vadd.f32 %v1077, 1e-05
        %v1110 = vadd.f32 %v1078, 1e-05
        %v1111 = vadd.f32 %v1079, 1e-05
        %v1112 = vadd.f32 %v1080, 1e-05
        %v1113 = vadd.f32 %v1081, 1e-05
        %v1114 = vadd.f32 %v1082, 1e-05
        %v1115 = vadd.f32 %v1083, 1e-05
        %v1116 = vadd.f32 %v1084, 1e-05
        %v1117 = vadd.f32 %v1085, 1e-05
        %v1118 = vadd.f32 %v1086, 1e-05
        %v1119 = vadd.f32 %v1087, 1e-05
        %v1120 = vadd.f32 %v1088, 1e-05
        %v1121 = vadd.f32 %v1089, 1e-05
        %v1122 = vadd.f32 %v1090, 1e-05
        %v1123 = vadd.f32 %v1091, 1e-05
        %v1124 = vadd.f32 %v1092, 1e-05
        %v1125 = vadd.f32 %v1093, 1e-05
        %v1126 = vadd.f32 %v1094, 1e-05
        %v1127 = vadd.f32 %v1095, 1e-05
        %v1128 = vadd.f32 %v1096, 1e-05
        %v1129 = vadd.f32 %v1097, 1e-05
        %v1130 = vadd.f32 %v1098, 1e-05
        %v1131 = vadd.f32 %v1099, 1e-05
        %v1132 = vrsqrt.pop %v1100
        %v1133 = vrsqrt.pop %v1101
        %v1134 = vrsqrt.pop %v1102
        %v1135 = vrsqrt.pop %v1103
        %v1136 = vrsqrt.pop %v1104
        %v1137 = vrsqrt.pop %v1105
        %v1138 = vrsqrt.pop %v1106
        %v1139 = vrsqrt.pop %v1107
        %v1140 = vrsqrt.pop %v1108
        %v1141 = vrsqrt.pop %v1109
        %v1142 = vrsqrt.pop %v1110
        %v1143 = vrsqrt.pop %v1111
        %v1144 = vrsqrt.pop %v1112
        %v1145 = vrsqrt.pop %v1113
        %v1146 = vrsqrt.pop %v1114
        %v1147 = vrsqrt.pop %v1115
        %v1148 = vrsqrt.pop %v1116
        %v1149 = vrsqrt.pop %v1117
        %v1150 = vrsqrt.pop %v1118
        %v1151 = vrsqrt.pop %v1119
        %v1152 = vrsqrt.pop %v1120
        %v1153 = vrsqrt.pop %v1121
        %v1154 = vrsqrt.pop %v1122
        %v1155 = vrsqrt.pop %v1123
        %v1156 = vrsqrt.pop %v1124
        %v1157 = vrsqrt.pop %v1125
        %v1158 = vrsqrt.pop %v1126
        %v1159 = vrsqrt.pop %v1127
        %v1160 = vrsqrt.pop %v1128
        %v1161 = vrsqrt.pop %v1129
        %v1162 = vrsqrt.pop %v1130
        %v1163 = vrsqrt.pop %v1131
        %v1164 = vmul.f32 %v940, %v1132
        %v1165 = vmul.f32 %v941, %v1133
        %v1166 = vmul.f32 %v942, %v1134
        %v1167 = vmul.f32 %v943, %v1135
        %v1168 = vmul.f32 %v944, %v1136
        %v1169 = vmul.f32 %v945, %v1137
        %v1170 = vmul.f32 %v946, %v1138
        %v1171 = vmul.f32 %v947, %v1139
        %v1172 = vmul.f32 %v948, %v1140
        %v1173 = vmul.f32 %v949, %v1141
        %v1174 = vmul.f32 %v950, %v1142
        %v1175 = vmul.f32 %v951, %v1143
        %v1176 = vmul.f32 %v952, %v1144
        %v1177 = vmul.f32 %v953, %v1145
        %v1178 = vmul.f32 %v954, %v1146
        %v1179 = vmul.f32 %v955, %v1147
        %v1180 = vmul.f32 %v956, %v1148
        %v1181 = vmul.f32 %v957, %v1149
        %v1182 = vmul.f32 %v958, %v1150
        %v1183 = vmul.f32 %v959, %v1151
        %v1184 = vmul.f32 %v960, %v1152
        %v1185 = vmul.f32 %v961, %v1153
        %v1186 = vmul.f32 %v962, %v1154
        %v1187 = vmul.f32 %v963, %v1155
        %v1188 = vmul.f32 %v964, %v1156
        %v1189 = vmul.f32 %v965, %v1157
        %v1190 = vmul.f32 %v966, %v1158
        %v1191 = vmul.f32 %v967, %v1159
        %v1192 = vmul.f32 %v968, %v1160
        %v1193 = vmul.f32 %v969, %v1161
        %v1194 = vmul.f32 %v970, %v1162
        %v1195 = vmul.f32 %v971, %v1163
        %v1196 = vld [vmem:[%s2 + $0x1] sm:$0x1]
        %v1197 = vlaneseq
        %v1198 = vshrl.u32 %v1197, 7
        %v1199 = vsub.s32 0, %v1198
        %v1200 = vrot.slane %v1196, %v1199
        %v1201 = vmul.f32 %v1164, %v1200
        %v1202 = vmul.f32 %v1165, %v1200
        %v1203 = vmul.f32 %v1166, %v1200
        %v1204 = vmul.f32 %v1167, %v1200
        %v1205 = vmul.f32 %v1168, %v1200
        %v1206 = vmul.f32 %v1169, %v1200
        %v1207 = vmul.f32 %v1170, %v1200
        %v1208 = vmul.f32 %v1171, %v1200
        %v1209 = vmul.f32 %v1172, %v1200
        %v1210 = vmul.f32 %v1173, %v1200
        %v1211 = vmul.f32 %v1174, %v1200
        %v1212 = vmul.f32 %v1175, %v1200
        %v1213 = vmul.f32 %v1176, %v1200
        %v1214 = vmul.f32 %v1177, %v1200
        %v1215 = vmul.f32 %v1178, %v1200
        %v1216 = vmul.f32 %v1179, %v1200
        %v1217 = vmul.f32 %v1180, %v1200
        %v1218 = vmul.f32 %v1181, %v1200
        %v1219 = vmul.f32 %v1182, %v1200
        %v1220 = vmul.f32 %v1183, %v1200
        %v1221 = vmul.f32 %v1184, %v1200
        %v1222 = vmul.f32 %v1185, %v1200
        %v1223 = vmul.f32 %v1186, %v1200
        %v1224 = vmul.f32 %v1187, %v1200
        %v1225 = vmul.f32 %v1188, %v1200
        %v1226 = vmul.f32 %v1189, %v1200
        %v1227 = vmul.f32 %v1190, %v1200
        %v1228 = vmul.f32 %v1191, %v1200
        %v1229 = vmul.f32 %v1192, %v1200
        %v1230 = vmul.f32 %v1193, %v1200
        %v1231 = vmul.f32 %v1194, %v1200
        %v1232 = vmul.f32 %v1195, %v1200
        %v1233 = vld [vmem:[%s2 + $0x2] sm:$0x1]
        %v1234 = vlaneseq
        %v1235 = vshrl.u32 %v1234, 7
        %v1236 = vsub.s32 0, %v1235
        %v1237 = vrot.slane %v1233, %v1236
        %v1238 = vadd.f32 %v1201, %v1237
        %v1239 = vadd.f32 %v1202, %v1237
        %v1240 = vadd.f32 %v1203, %v1237
        %v1241 = vadd.f32 %v1204, %v1237
        %v1242 = vadd.f32 %v1205, %v1237
        %v1243 = vadd.f32 %v1206, %v1237
        %v1244 = vadd.f32 %v1207, %v1237
        %v1245 = vadd.f32 %v1208, %v1237
        %v1246 = vadd.f32 %v1209, %v1237
        %v1247 = vadd.f32 %v1210, %v1237
        %v1248 = vadd.f32 %v1211, %v1237
        %v1249 = vadd.f32 %v1212, %v1237
        %v1250 = vadd.f32 %v1213, %v1237
        %v1251 = vadd.f32 %v1214, %v1237
        %v1252 = vadd.f32 %v1215, %v1237
        %v1253 = vadd.f32 %v1216, %v1237
        %v1254 = vadd.f32 %v1217, %v1237
        %v1255 = vadd.f32 %v1218, %v1237
        %v1256 = vadd.f32 %v1219, %v1237
        %v1257 = vadd.f32 %v1220, %v1237
        %v1258 = vadd.f32 %v1221, %v1237
        %v1259 = vadd.f32 %v1222, %v1237
        %v1260 = vadd.f32 %v1223, %v1237
        %v1261 = vadd.f32 %v1224, %v1237
        %v1262 = vadd.f32 %v1225, %v1237
        %v1263 = vadd.f32 %v1226, %v1237
        %v1264 = vadd.f32 %v1227, %v1237
        %v1265 = vadd.f32 %v1228, %v1237
        %v1266 = vadd.f32 %v1229, %v1237
        %v1267 = vadd.f32 %v1230, %v1237
        %v1268 = vadd.f32 %v1231, %v1237
        %v1269 = vadd.f32 %v1232, %v1237
        %v1270 = vpack.c.bf16 %v1239, %v1238
        %v1271 = vpack.c.bf16 %v1241, %v1240
        %v1272 = vpack.c.bf16 %v1243, %v1242
        %v1273 = vpack.c.bf16 %v1245, %v1244
        %v1274 = vpack.c.bf16 %v1247, %v1246
        %v1275 = vpack.c.bf16 %v1249, %v1248
        %v1276 = vpack.c.bf16 %v1251, %v1250
        %v1277 = vpack.c.bf16 %v1253, %v1252
        %v1278 = vpack.c.bf16 %v1255, %v1254
        %v1279 = vpack.c.bf16 %v1257, %v1256
        %v1280 = vpack.c.bf16 %v1259, %v1258
        %v1281 = vpack.c.bf16 %v1261, %v1260
        %v1282 = vpack.c.bf16 %v1263, %v1262
        %v1283 = vpack.c.bf16 %v1265, %v1264
        %v1284 = vpack.c.bf16 %v1267, %v1266
        %v1285 = vpack.c.bf16 %v1269, %v1268
        %v1286 = vld [vmem:[%s3] sm:$0xf]
        %v1287 = vld [vmem:[%s3 + $0x4] sm:$0xf]
        %v1288 = vld [vmem:[%s3 + $0x8] sm:$0xf]
        %v1289 = vld [vmem:[%s3 + $0xc] sm:$0xf]
        %v1290 = vld [vmem:[%s3 + $0x10] sm:$0xf]
        %v1291 = vld [vmem:[%s3 + $0x14] sm:$0xf]
        %v1292 = vld [vmem:[%s3 + $0x18] sm:$0xf]
        %v1293 = vld [vmem:[%s3 + $0x1c] sm:$0xf]
        %v1294 = vld [vmem:[%s3 + $0x20] sm:$0xf]
        %v1295 = vld [vmem:[%s3 + $0x24] sm:$0xf]
        %v1296 = vld [vmem:[%s3 + $0x28] sm:$0xf]
        %v1297 = vld [vmem:[%s3 + $0x2c] sm:$0xf]
        %v1298 = vld [vmem:[%s3 + $0x30] sm:$0xf]
        %v1299 = vld [vmem:[%s3 + $0x34] sm:$0xf]
        %v1300 = vld [vmem:[%s3 + $0x38] sm:$0xf]
        %v1301 = vld [vmem:[%s3 + $0x3c] sm:$0xf]
        %s1302 = sld [smem:[#allocation2]]
        %v1303 = vstv %s1302
        %v1320 = vunpack.c.l.b16 %v1286
        %v1321 = vunpack.c.l.b16 %v1287
        %v1322 = vunpack.c.l.b16 %v1288
        %v1323 = vunpack.c.l.b16 %v1289
        %v1324 = vunpack.c.l.b16 %v1290
        %v1325 = vunpack.c.l.b16 %v1291
        %v1326 = vunpack.c.l.b16 %v1292
        %v1327 = vunpack.c.l.b16 %v1293
        %v1328 = vunpack.c.l.b16 %v1294
        %v1329 = vunpack.c.l.b16 %v1295
        %v1330 = vunpack.c.l.b16 %v1296
        %v1331 = vunpack.c.l.b16 %v1297
        %v1332 = vunpack.c.l.b16 %v1298
        %v1333 = vunpack.c.l.b16 %v1299
        %v1334 = vunpack.c.l.b16 %v1300
        %v1335 = vunpack.c.l.b16 %v1301
        %v1336 = vpack.c.b16 %v1321, %v1320
        %v1337 = vpack.c.b16 %v1323, %v1322
        %v1338 = vpack.c.b16 %v1325, %v1324
        %v1339 = vpack.c.b16 %v1327, %v1326
        %v1340 = vpack.c.b16 %v1329, %v1328
        %v1341 = vpack.c.b16 %v1331, %v1330
        %v1342 = vpack.c.b16 %v1333, %v1332
        %v1343 = vpack.c.b16 %v1335, %v1334
        %1352 = vmatprep.subr.bf16.mxu0 0
        %1353 = vmatpush1.bf16.msra.mxu0 %v1343
        %1354 = vmatprep.subr.bf16.mxu0 0
        %1355 = vmatpush1.bf16.msra.mxu0 %v1342
        %1356 = vmatprep.subr.bf16.mxu0 0
        %1357 = vmatpush1.bf16.msra.mxu0 %v1341
        %1358 = vmatprep.subr.bf16.mxu0 0
        %1359 = vmatpush1.bf16.msra.mxu0 %v1340
        %1360 = vmatprep.subr.bf16.mxu0 0
        %1361 = vmatpush1.bf16.msra.mxu0 %v1339
        %1362 = vmatprep.subr.bf16.mxu0 0
        %1363 = vmatpush1.bf16.msra.mxu0 %v1338
        %1364 = vmatprep.subr.bf16.mxu0 0
        %1365 = vmatpush1.bf16.msra.mxu0 %v1337
        %1366 = vmatprep.subr.bf16.mxu0 0
        %1367 = vmatpush1.bf16.msra.mxu0 %v1336
        %1368 = vmatprep.subr.bf16.mxu0 0
        %1369 = vmatpush2.bf16.msra.mxu0 0
        %1370 = vmatprep.subr.bf16.mxu0 0
        %1371 = vmatpush2.bf16.msra.mxu0 0
        %1372 = vmatprep.subr.bf16.mxu0 0
        %1373 = vmatpush2.bf16.msra.mxu0 0
        %1374 = vmatprep.subr.bf16.mxu0 0
        %1375 = vmatpush2.bf16.msra.mxu0 0
        %1376 = vmatprep.subr.bf16.mxu0 0
        %1377 = vmatpush2.bf16.msra.mxu0 0
        %1378 = vmatprep.subr.bf16.mxu0 0
        %1379 = vmatpush2.bf16.msra.mxu0 0
        %1380 = vmatprep.subr.bf16.mxu0 0
        %1381 = vmatpush2.bf16.msra.mxu0 0
        %1382 = vmatprep.subr.bf16.mxu0 0
        %1383 = vmatpush2.bf16.msra.mxu0 0
        %1384 = vmatprep.mubr.bf16.mxu0 0
        %1385 = vmatmul.mubr.bf16.gmra.mxu0 %v1270
        %v1386 = vpop.f32.mrf.mxu0
        %v1387 = vadd.f32 %v1303, %v1386
        %v1388 = vpop.f32.mrf.mxu0
        %v1389 = vpop.f32.mrf.mxu0
        %v1390 = vadd.f32 %v1303, %v1389
        %v1391 = vpop.f32.mrf.mxu0
        %1392 = vmatprep.mubr.bf16.mxu0 0
        %1393 = vmatmul.mubr.bf16.gmra.mxu0 %v1271
        %v1394 = vpop.f32.mrf.mxu0
        %v1395 = vadd.f32 %v1303, %v1394
        %v1396 = vpop.f32.mrf.mxu0
        %v1397 = vpop.f32.mrf.mxu0
        %v1398 = vadd.f32 %v1303, %v1397
        %v1399 = vpop.f32.mrf.mxu0
        %1400 = vmatprep.mubr.bf16.mxu0 0
        %1401 = vmatmul.mubr.bf16.gmra.mxu0 %v1272
        %v1402 = vpop.f32.mrf.mxu0
        %v1403 = vadd.f32 %v1303, %v1402
        %v1404 = vpop.f32.mrf.mxu0
        %v1405 = vpop.f32.mrf.mxu0
        %v1406 = vadd.f32 %v1303, %v1405
        %v1407 = vpop.f32.mrf.mxu0
        %1408 = vmatprep.mubr.bf16.mxu0 0
        %1409 = vmatmul.mubr.bf16.gmra.mxu0 %v1273
        %v1410 = vpop.f32.mrf.mxu0
        %v1411 = vadd.f32 %v1303, %v1410
        %v1412 = vpop.f32.mrf.mxu0
        %v1413 = vpop.f32.mrf.mxu0
        %v1414 = vadd.f32 %v1303, %v1413
        %v1415 = vpop.f32.mrf.mxu0
        %1416 = vmatprep.mubr.bf16.mxu0 0
        %1417 = vmatmul.mubr.bf16.gmra.mxu0 %v1274
        %v1418 = vpop.f32.mrf.mxu0
        %v1419 = vadd.f32 %v1303, %v1418
        %v1420 = vpop.f32.mrf.mxu0
        %v1421 = vpop.f32.mrf.mxu0
        %v1422 = vadd.f32 %v1303, %v1421
        %v1423 = vpop.f32.mrf.mxu0
        %1424 = vmatprep.mubr.bf16.mxu0 0
        %1425 = vmatmul.mubr.bf16.gmra.mxu0 %v1275
        %v1426 = vpop.f32.mrf.mxu0
        %v1427 = vadd.f32 %v1303, %v1426
        %v1428 = vpop.f32.mrf.mxu0
        %v1429 = vpop.f32.mrf.mxu0
        %v1430 = vadd.f32 %v1303, %v1429
        %v1431 = vpop.f32.mrf.mxu0
        %1432 = vmatprep.mubr.bf16.mxu0 0
        %1433 = vmatmul.mubr.bf16.gmra.mxu0 %v1276
        %v1434 = vpop.f32.mrf.mxu0
        %v1435 = vadd.f32 %v1303, %v1434
        %v1436 = vpop.f32.mrf.mxu0
        %v1437 = vpop.f32.mrf.mxu0
        %v1438 = vadd.f32 %v1303, %v1437
        %v1439 = vpop.f32.mrf.mxu0
        %1440 = vmatprep.mubr.bf16.mxu0 0
        %1441 = vmatmul.mubr.bf16.gmra.mxu0 %v1277
        %v1442 = vpop.f32.mrf.mxu0
        %v1443 = vadd.f32 %v1303, %v1442
        %v1444 = vpop.f32.mrf.mxu0
        %v1445 = vpop.f32.mrf.mxu0
        %v1446 = vadd.f32 %v1303, %v1445
        %v1447 = vpop.f32.mrf.mxu0
        %1448 = vmatprep.mubr.bf16.mxu0 0
        %1449 = vmatmul.mubr.bf16.gmra.mxu0 %v1278
        %v1450 = vpop.f32.mrf.mxu0
        %v1451 = vadd.f32 %v1303, %v1450
        %v1452 = vpop.f32.mrf.mxu0
        %v1453 = vpop.f32.mrf.mxu0
        %v1454 = vadd.f32 %v1303, %v1453
        %v1455 = vpop.f32.mrf.mxu0
        %1456 = vmatprep.mubr.bf16.mxu0 0
        %1457 = vmatmul.mubr.bf16.gmra.mxu0 %v1279
        %v1458 = vpop.f32.mrf.mxu0
        %v1459 = vadd.f32 %v1303, %v1458
        %v1460 = vpop.f32.mrf.mxu0
        %v1461 = vpop.f32.mrf.mxu0
        %v1462 = vadd.f32 %v1303, %v1461
        %v1463 = vpop.f32.mrf.mxu0
        %1464 = vmatprep.mubr.bf16.mxu0 0
        %1465 = vmatmul.mubr.bf16.gmra.mxu0 %v1280
        %v1466 = vpop.f32.mrf.mxu0
        %v1467 = vadd.f32 %v1303, %v1466
        %v1468 = vpop.f32.mrf.mxu0
        %v1469 = vpop.f32.mrf.mxu0
        %v1470 = vadd.f32 %v1303, %v1469
        %v1471 = vpop.f32.mrf.mxu0
        %1472 = vmatprep.mubr.bf16.mxu0 0
        %1473 = vmatmul.mubr.bf16.gmra.mxu0 %v1281
        %v1474 = vpop.f32.mrf.mxu0
        %v1475 = vadd.f32 %v1303, %v1474
        %v1476 = vpop.f32.mrf.mxu0
        %v1477 = vpop.f32.mrf.mxu0
        %v1478 = vadd.f32 %v1303, %v1477
        %v1479 = vpop.f32.mrf.mxu0
        %1480 = vmatprep.mubr.bf16.mxu0 0
        %1481 = vmatmul.mubr.bf16.gmra.mxu0 %v1282
        %v1482 = vpop.f32.mrf.mxu0
        %v1483 = vadd.f32 %v1303, %v1482
        %v1484 = vpop.f32.mrf.mxu0
        %v1485 = vpop.f32.mrf.mxu0
        %v1486 = vadd.f32 %v1303, %v1485
        %v1487 = vpop.f32.mrf.mxu0
        %1488 = vmatprep.mubr.bf16.mxu0 0
        %1489 = vmatmul.mubr.bf16.gmra.mxu0 %v1283
        %v1490 = vpop.f32.mrf.mxu0
        %v1491 = vadd.f32 %v1303, %v1490
        %v1492 = vpop.f32.mrf.mxu0
        %v1493 = vpop.f32.mrf.mxu0
        %v1494 = vadd.f32 %v1303, %v1493
        %v1495 = vpop.f32.mrf.mxu0
        %1496 = vmatprep.mubr.bf16.mxu0 0
        %1497 = vmatmul.mubr.bf16.gmra.mxu0 %v1284
        %v1498 = vpop.f32.mrf.mxu0
        %v1499 = vadd.f32 %v1303, %v1498
        %v1500 = vpop.f32.mrf.mxu0
        %v1501 = vpop.f32.mrf.mxu0
        %v1502 = vadd.f32 %v1303, %v1501
        %v1503 = vpop.f32.mrf.mxu0
        %1504 = vmatprep.mubr.bf16.mxu0 0
        %1505 = vmatmul.mubr.bf16.gmra.mxu0 %v1285
        %v1506 = vpop.f32.mrf.mxu0
        %v1507 = vadd.f32 %v1303, %v1506
        %v1508 = vpop.f32.mrf.mxu0
        %v1509 = vpop.f32.mrf.mxu0
        %v1510 = vadd.f32 %v1303, %v1509
        %v1511 = vpop.f32.mrf.mxu0
        %1512 = vdwg.mxu0
        %v1513 = vpack.c.bf16 %v1390, %v1387
        %v1514 = vpack.c.bf16 %v1398, %v1395
        %v1515 = vpack.c.bf16 %v1406, %v1403
        %v1516 = vpack.c.bf16 %v1414, %v1411
        %v1517 = vpack.c.bf16 %v1422, %v1419
        %v1518 = vpack.c.bf16 %v1430, %v1427
        %v1519 = vpack.c.bf16 %v1438, %v1435
        %v1520 = vpack.c.bf16 %v1446, %v1443
        %v1521 = vpack.c.bf16 %v1454, %v1451
        %v1522 = vpack.c.bf16 %v1462, %v1459
        %v1523 = vpack.c.bf16 %v1470, %v1467
        %v1524 = vpack.c.bf16 %v1478, %v1475
        %v1525 = vpack.c.bf16 %v1486, %v1483
        %v1526 = vpack.c.bf16 %v1494, %v1491
        %v1527 = vpack.c.bf16 %v1502, %v1499
        %v1528 = vpack.c.bf16 %v1510, %v1507
        %v1545 = vunpack.c.l.b16 %v1513
        %v1546 = vunpack.c.h.b16 %v1513
        %v1547 = vunpack.c.l.b16 %v1514
        %v1548 = vunpack.c.h.b16 %v1514
        %v1549 = vunpack.c.l.b16 %v1515
        %v1550 = vunpack.c.h.b16 %v1515
        %v1551 = vunpack.c.l.b16 %v1516
        %v1552 = vunpack.c.h.b16 %v1516
        %v1553 = vunpack.c.l.b16 %v1517
        %v1554 = vunpack.c.h.b16 %v1517
        %v1555 = vunpack.c.l.b16 %v1518
        %v1556 = vunpack.c.h.b16 %v1518
        %v1557 = vunpack.c.l.b16 %v1519
        %v1558 = vunpack.c.h.b16 %v1519
        %v1559 = vunpack.c.l.b16 %v1520
        %v1560 = vunpack.c.h.b16 %v1520
        %v1561 = vunpack.c.l.b16 %v1521
        %v1562 = vunpack.c.h.b16 %v1521
        %v1563 = vunpack.c.l.b16 %v1522
        %v1564 = vunpack.c.h.b16 %v1522
        %v1565 = vunpack.c.l.b16 %v1523
        %v1566 = vunpack.c.h.b16 %v1523
        %v1567 = vunpack.c.l.b16 %v1524
        %v1568 = vunpack.c.h.b16 %v1524
        %v1569 = vunpack.c.l.b16 %v1525
        %v1570 = vunpack.c.h.b16 %v1525
        %v1571 = vunpack.c.l.b16 %v1526
        %v1572 = vunpack.c.h.b16 %v1526
        %v1573 = vunpack.c.l.b16 %v1527
        %v1574 = vunpack.c.h.b16 %v1527
        %v1575 = vunpack.c.l.b16 %v1528
        %v1576 = vunpack.c.h.b16 %v1528
        %v1577 = vpack.c.b16 %v1545, %v1545
        %v1578 = vpack.c.b16 %v1546, %v1546
        %v1579 = vpack.c.b16 %v1547, %v1547
        %v1580 = vpack.c.b16 %v1548, %v1548
        %v1581 = vpack.c.b16 %v1549, %v1549
        %v1582 = vpack.c.b16 %v1550, %v1550
        %v1583 = vpack.c.b16 %v1551, %v1551
        %v1584 = vpack.c.b16 %v1552, %v1552
        %v1585 = vpack.c.b16 %v1553, %v1553
        %v1586 = vpack.c.b16 %v1554, %v1554
        %v1587 = vpack.c.b16 %v1555, %v1555
        %v1588 = vpack.c.b16 %v1556, %v1556
        %v1589 = vpack.c.b16 %v1557, %v1557
        %v1590 = vpack.c.b16 %v1558, %v1558
        %v1591 = vpack.c.b16 %v1559, %v1559
        %v1592 = vpack.c.b16 %v1560, %v1560
        %v1593 = vpack.c.b16 %v1561, %v1561
        %v1594 = vpack.c.b16 %v1562, %v1562
        %v1595 = vpack.c.b16 %v1563, %v1563
        %v1596 = vpack.c.b16 %v1564, %v1564
        %v1597 = vpack.c.b16 %v1565, %v1565
        %v1598 = vpack.c.b16 %v1566, %v1566
        %v1599 = vpack.c.b16 %v1567, %v1567
        %v1600 = vpack.c.b16 %v1568, %v1568
        %v1601 = vpack.c.b16 %v1569, %v1569
        %v1602 = vpack.c.b16 %v1570, %v1570
        %v1603 = vpack.c.b16 %v1571, %v1571
        %v1604 = vpack.c.b16 %v1572, %v1572
        %v1605 = vpack.c.b16 %v1573, %v1573
        %v1606 = vpack.c.b16 %v1574, %v1574
        %v1607 = vpack.c.b16 %v1575, %v1575
        %v1608 = vpack.c.b16 %v1576, %v1576
        %1641 = vst [vmem:[%s401] sm:$0xf] %v1577
        %1642 = vst [vmem:[%s401 + $0x4] sm:$0xf] %v1578
        %1643 = vst [vmem:[%s401 + $0x8] sm:$0xf] %v1579
        %1644 = vst [vmem:[%s401 + $0xc] sm:$0xf] %v1580
        %1645 = vst [vmem:[%s401 + $0x10] sm:$0xf] %v1581
        %1646 = vst [vmem:[%s401 + $0x14] sm:$0xf] %v1582
        %1647 = vst [vmem:[%s401 + $0x18] sm:$0xf] %v1583
        %1648 = vst [vmem:[%s401 + $0x1c] sm:$0xf] %v1584
        %1649 = vst [vmem:[%s401 + $0x20] sm:$0xf] %v1585
        %1650 = vst [vmem:[%s401 + $0x24] sm:$0xf] %v1586
        %1651 = vst [vmem:[%s401 + $0x28] sm:$0xf] %v1587
        %1652 = vst [vmem:[%s401 + $0x2c] sm:$0xf] %v1588
        %1653 = vst [vmem:[%s401 + $0x30] sm:$0xf] %v1589
        %1654 = vst [vmem:[%s401 + $0x34] sm:$0xf] %v1590
        %1655 = vst [vmem:[%s401 + $0x38] sm:$0xf] %v1591
        %1656 = vst [vmem:[%s401 + $0x3c] sm:$0xf] %v1592
        %1657 = vst [vmem:[%s401 + $0x40] sm:$0xf] %v1593
        %1658 = vst [vmem:[%s401 + $0x44] sm:$0xf] %v1594
        %1659 = vst [vmem:[%s401 + $0x48] sm:$0xf] %v1595
        %1660 = vst [vmem:[%s401 + $0x4c] sm:$0xf] %v1596
        %1661 = vst [vmem:[%s401 + $0x50] sm:$0xf] %v1597
        %1662 = vst [vmem:[%s401 + $0x54] sm:$0xf] %v1598
        %1663 = vst [vmem:[%s401 + $0x58] sm:$0xf] %v1599
        %1664 = vst [vmem:[%s401 + $0x5c] sm:$0xf] %v1600
        %1665 = vst [vmem:[%s401 + $0x60] sm:$0xf] %v1601
        %1666 = vst [vmem:[%s401 + $0x64] sm:$0xf] %v1602
        %1667 = vst [vmem:[%s401 + $0x68] sm:$0xf] %v1603
        %1668 = vst [vmem:[%s401 + $0x6c] sm:$0xf] %v1604
        %1669 = vst [vmem:[%s401 + $0x70] sm:$0xf] %v1605
        %1670 = vst [vmem:[%s401 + $0x74] sm:$0xf] %v1606
        %1671 = vst [vmem:[%s401 + $0x78] sm:$0xf] %v1607
        %1672 = vst [vmem:[%s401 + $0x7c] sm:$0xf] %v1608
        %s1673 = sand.u32 %s154, 1
        %s1674 = scalar_lea.sflag [#allocation5], %s1673
        %s1675 = sand.u32 %s154, 1
        %s1676 = smul.addr %s1675, 128
        %s1677 = scalar_lea.vmem [#allocation4], %s1676
        // Predicated region
        $region79: #{graphormer_forward.1} parent=73 // pred_check
          %p1678 = pneg %p164
        $region80: #{graphormer_forward.1} parent=73 // pred_check_branch
          %1680 = sbr.rel (%p1678) target = $region82
        $region81: #{graphormer_forward.1} parent=73 // pred_region
          %s1681 = smul.u32 32, %s25
          %s1683 = ssub.s32 2048, 2048
          %1684 = vsyncadd %s1674, %s1683
          %s1685 = smul.addr %s24, 32
          %s1686 = sadd.s32 %s1681, %s1685
          %s1687 = smul.addr %s1686, 64
          %s1688 = scalar_lea.hbm %s5, %s1687
          %s1689 = sshll.u32 %s1677, 4
          %s1690 = int_to_ptr.vmem [resolvable:$true] %s1689
          %1695 = dma.vmem_to_hbm [thread:$0]  %s1690, 2048, %s1688, %s1674, 64, 64, 4
        $region82: #{graphormer_forward.1} parent=73 // pred_fallthru
          _
      $region74: #{graphormer_forward.1} parent=5 // pred_fallthru
        _
      %p1696 = scmp.le.s32.totalorder 2, %s15
      // Predicated region
      $region83: #{graphormer_forward.1} parent=5 // pred_check
        %p1697 = pneg %p1696
      $region84: #{graphormer_forward.1} parent=5 // pred_check_branch
        %1699 = sbr.rel (%p1697) target = $region86
      $region85: #{graphormer_forward.1} parent=5 // pred_region
        %s1700 = ssub.s32 %s15, 2
        // Predicated region
        $region87: #{graphormer_forward.1} parent=85 // pred_check
          %p1701 = pneg %p170
        $region88: #{graphormer_forward.1} parent=85 // pred_check_branch
          %1703 = sbr.rel (%p1701) target = $region90
        $region89: #{graphormer_forward.1} parent=85 // pred_region
          %s1704 = sand.u32 %s155, 1
          %s1705 = scalar_lea.sflag [#allocation5], %s1704
          %s1706 = sand.u32 %s155, 1
          %s1707 = smul.addr %s1706, 128
          %s1708 = scalar_lea.vmem [#allocation4], %s1707
          %1709 = dma.done %s1705, 2048
        $region90: #{graphormer_forward.1} parent=85 // pred_fallthru
          _
      $region86: #{graphormer_forward.1} parent=5 // pred_fallthru
        _
    $region6: #{graphormer_forward.1} parent=1 // loop_footer
      %s19 = sadd.s32 1, %s15
    $region7: #{graphormer_forward.1} parent=1 // loop_footer_branch
      %14 = sbr.rel target = $region3
    $region8: #{graphormer_forward.1} parent=1 // loop_exit
      _
    %1710 = vsyncpa [#allocation5], 1
    %s1711 = scalar_lea.sflag [#allocation5], 1
    %1712 = vsyncpa %s1711, 1

</llo_original>
